<compile_context>
chip_gen: v6e
topology: v6e:2x2x1
jax: 0.10.0
libtpu: 0.0.40
codegen_flags: <defaults>
</compile_context>

<pallas_src>
import jax
import jax.numpy as jnp
from jax.experimental import pallas as pl
from jax.experimental.pallas import tpu as pltpu


def _round_up(x, m):
    return ((x + m - 1) // m) * m


def _mean_aggre_kernel(nbr_ref, out_ref):
    # nbr_ref: (tile_n, K, tile_d) VMEM tile of neighbour messages
    # out_ref: (tile_n, tile_d)    VMEM tile of aggregated output
    k = nbr_ref.shape[1]
    # Accumulate a single (tile_n, tile_d) f32 accumulator over the neighbour
    # axis (K is small and static, so this unrolls); avoids a full f32 upcast
    # of the whole block and keeps the reduce on plain VPU adds.
    acc = nbr_ref[:, 0, :].astype(jnp.float32)
    for i in range(1, k):
        acc = acc + nbr_ref[:, i, :].astype(jnp.float32)
    # mean over the neighbour axis, matching torch.mean(neighbour, dim=1)
    out_ref[...] = (acc * (1.0 / k)).astype(out_ref.dtype)


def aggregator_forward(neighbour, *, tile_n=None, tile_d=None, use_pallas=None,
                       min_pallas_bytes=4 * 1024 * 1024):
    """Pallas equivalent of Aggregator.forward: {'c': aggre(node.mailbox['m'])}.

    neighbour: [N, K, D] array of neighbour messages (dense, fixed-K mailbox).
    Returns dict with 'c': [N, D] mean-aggregated messages.
    """
    N, K, D = neighbour.shape
    itemsize = neighbour.dtype.itemsize
    total_bytes = N * K * D * itemsize

    if use_pallas is None:
        # At tiny sizes, pallas_call launch + single-step overhead dominates;
        # XLA's fused reduce is already at roofline there.
        use_pallas = total_bytes >= min_pallas_bytes
    if not use_pallas:
        return {"c": jnp.mean(neighbour, axis=1)}

    # Lane-dense layout: pad the feature axis to a multiple of 128 so the
    # output stores are full-lane (no masked partial stores).  Zero-padding is
    # harmless: padded columns are sliced off after the call.
    D_pad = _round_up(D, 128)
    x = neighbour if D_pad == D else jnp.pad(
        neighbour, ((0, 0), (0, 0), (0, D_pad - D)))

    # ---- tile selection -------------------------------------------------
    if tile_d is None:
        tile_d = min(D_pad, 1024)          # multiple of 128 (D_pad is)
    if tile_n is None:
        # Target ~1 MiB of input per grid step; double-buffered in + out then
        # stays well under every generation's scoped-VMEM default.
        target_in_bytes = 1 << 20
        t = max(8, target_in_bytes // (K * tile_d * itemsize))
        t = max(8, (t // 8) * 8)
        if N > 16:
            # Keep >= 2 grid steps along N so the parallel grid can shard
            # across v7x's two TensorCores.
            half8 = max(8, _round_up(-(-N // 2), 8))
            t = min(t, half8)
        tile_n = min(t, N)

    grid = (pl.cdiv(N, tile_n), pl.cdiv(D_pad, tile_d))

    c_pad = pl.pallas_call(
        _mean_aggre_kernel,
        out_shape=jax.ShapeDtypeStruct((N, D_pad), neighbour.dtype),
        grid_spec=pltpu.PrefetchScalarGridSpec(
            num_scalar_prefetch=0,
            grid=grid,
            in_specs=[
                pl.BlockSpec((tile_n, K, tile_d), lambda i, j: (i, 0, j)),
            ],
            out_specs=pl.BlockSpec((tile_n, tile_d), lambda i, j: (i, j)),
        ),
        compiler_params=pltpu.CompilerParams(
            dimension_semantics=("parallel", "parallel"),
        ),
    )(x)

    c = c_pad if D_pad == D else c_pad[:, :D]

    # TODO(synk): base Aggregator.aggre is abstract; mean aggregation (the
    # MeanAggregator subclass) is the concrete semantics implemented here.
    # For ragged/padded mailboxes a per-node degree (scalar prefetch) would be
    # needed instead of the fixed divisor K.
    return {"c": c}


if __name__ == "__main__":
    key = jax.random.PRNGKey(0)
    k1, k2, k3 = jax.random.split(key, 3)

    # Case 1: lane-aligned shapes, multi-step grid along N.
    n1 = jax.random.normal(k1, (256, 8, 128), dtype=jnp.float32)
    c1 = jax.block_until_ready(aggregator_forward(n1, use_pallas=True)["c"])
    ref1 = jnp.mean(n1, axis=1)
    assert c1.shape == (256, 128)
    assert jnp.allclose(c1, ref1, atol=1e-5, rtol=1e-5)

    # Case 2: ragged N and sub-128 feature dim (padded to lane width inside
    # the wrapper, tail N block handled by pl.cdiv block padding).
    n2 = jax.random.normal(k2, (50, 10, 96), dtype=jnp.float32)
    c2 = jax.block_until_ready(aggregator_forward(n2, use_pallas=True)["c"])
    ref2 = jnp.mean(n2, axis=1)
    assert c2.shape == (50, 96)
    assert jnp.allclose(c2, ref2, atol=1e-5, rtol=1e-5)

    # Case 3: bf16 input — f32 accumulation inside the kernel.
    n3 = jax.random.normal(k3, (64, 8, 128), dtype=jnp.bfloat16)
    c3 = jax.block_until_ready(aggregator_forward(n3, use_pallas=True)["c"])
    ref3 = jnp.mean(n3.astype(jnp.float32), axis=1)
    assert c3.shape == (64, 128)
    assert jnp.allclose(c3.astype(jnp.float32), ref3, atol=2e-2, rtol=2e-2)

    print("KERNEL_OK")
</pallas_src>

<mosaic_0001>
module attributes {stable_mosaic.version = 11 : i64} {
  func.func @_mean_aggre_kernel(%arg0: i32, %arg1: i32, %arg2: memref<128x8x128xf32, #tpu.memory_space<vmem>>, %arg3: memref<128x128xf32, #tpu.memory_space<vmem>>) attributes {dimension_semantics = [#tpu.dimension_semantics<parallel>, #tpu.dimension_semantics<parallel>], iteration_bounds = array<i64: 2, 1>, scalar_prefetch = 0 : i64, scratch_operands = 0 : i64, tpu.core_type = #tpu.core_type<tc>, window_params = [{transform_indices = @transform_0, window_bounds = array<i64: 128, 8, 128>}, {transform_indices = @transform_1, window_bounds = array<i64: 128, 128>}]} {
    %c0 = arith.constant 0 : index
    %c0_0 = arith.constant 0 : index
    %c0_1 = arith.constant 0 : index
    %0 = vector.load %arg2[%c0, %c0_0, %c0_1] : memref<128x8x128xf32, #tpu.memory_space<vmem>>, vector<128x1x128xf32>
    %1 = vector.shape_cast %0 : vector<128x1x128xf32> to vector<128x128xf32>
    %c0_2 = arith.constant 0 : index
    %c1 = arith.constant 1 : index
    %c0_3 = arith.constant 0 : index
    %2 = vector.load %arg2[%c0_2, %c1, %c0_3] : memref<128x8x128xf32, #tpu.memory_space<vmem>>, vector<128x1x128xf32>
    %3 = vector.shape_cast %2 : vector<128x1x128xf32> to vector<128x128xf32>
    %4 = arith.addf %1, %3 : vector<128x128xf32>
    %c0_4 = arith.constant 0 : index
    %c2 = arith.constant 2 : index
    %c0_5 = arith.constant 0 : index
    %5 = vector.load %arg2[%c0_4, %c2, %c0_5] : memref<128x8x128xf32, #tpu.memory_space<vmem>>, vector<128x1x128xf32>
    %6 = vector.shape_cast %5 : vector<128x1x128xf32> to vector<128x128xf32>
    %7 = arith.addf %4, %6 : vector<128x128xf32>
    %c0_6 = arith.constant 0 : index
    %c3 = arith.constant 3 : index
    %c0_7 = arith.constant 0 : index
    %8 = vector.load %arg2[%c0_6, %c3, %c0_7] : memref<128x8x128xf32, #tpu.memory_space<vmem>>, vector<128x1x128xf32>
    %9 = vector.shape_cast %8 : vector<128x1x128xf32> to vector<128x128xf32>
    %10 = arith.addf %7, %9 : vector<128x128xf32>
    %c0_8 = arith.constant 0 : index
    %c4 = arith.constant 4 : index
    %c0_9 = arith.constant 0 : index
    %11 = vector.load %arg2[%c0_8, %c4, %c0_9] : memref<128x8x128xf32, #tpu.memory_space<vmem>>, vector<128x1x128xf32>
    %12 = vector.shape_cast %11 : vector<128x1x128xf32> to vector<128x128xf32>
    %13 = arith.addf %10, %12 : vector<128x128xf32>
    %c0_10 = arith.constant 0 : index
    %c5 = arith.constant 5 : index
    %c0_11 = arith.constant 0 : index
    %14 = vector.load %arg2[%c0_10, %c5, %c0_11] : memref<128x8x128xf32, #tpu.memory_space<vmem>>, vector<128x1x128xf32>
    %15 = vector.shape_cast %14 : vector<128x1x128xf32> to vector<128x128xf32>
    %16 = arith.addf %13, %15 : vector<128x128xf32>
    %c0_12 = arith.constant 0 : index
    %c6 = arith.constant 6 : index
    %c0_13 = arith.constant 0 : index
    %17 = vector.load %arg2[%c0_12, %c6, %c0_13] : memref<128x8x128xf32, #tpu.memory_space<vmem>>, vector<128x1x128xf32>
    %18 = vector.shape_cast %17 : vector<128x1x128xf32> to vector<128x128xf32>
    %19 = arith.addf %16, %18 : vector<128x128xf32>
    %c0_14 = arith.constant 0 : index
    %c7 = arith.constant 7 : index
    %c0_15 = arith.constant 0 : index
    %20 = vector.load %arg2[%c0_14, %c7, %c0_15] : memref<128x8x128xf32, #tpu.memory_space<vmem>>, vector<128x1x128xf32>
    %21 = vector.shape_cast %20 : vector<128x1x128xf32> to vector<128x128xf32>
    %22 = arith.addf %19, %21 : vector<128x128xf32>
    %cst = arith.constant 1.250000e-01 : f32
    %23 = vector.broadcast %cst : f32 to vector<128x128xf32>
    %24 = arith.mulf %22, %23 : vector<128x128xf32>
    %c0_16 = arith.constant 0 : index
    %c0_17 = arith.constant 0 : index
    %25 = vector.load %arg3[%c0_16, %c0_17] : memref<128x128xf32, #tpu.memory_space<vmem>>, vector<128x128xf32>
    tpu.vector_store %arg3[%c0_16, %c0_17], %24 {strides = array<i32>} : memref<128x128xf32, #tpu.memory_space<vmem>>, vector<128x128xf32>,
    return
  }
  func.func @transform_0(%arg0: i32, %arg1: i32) -> (i32, i32, i32) {
    %c0_i32 = arith.constant 0 : i32
    %c0_i32_0 = arith.constant 0 : i32
    return %arg0, %c0_i32, %arg1 : i32, i32, i32
  }
  func.func @transform_1(%arg0: i32, %arg1: i32) -> (i32, i32) {
    %c0_i32 = arith.constant 0 : i32
    return %arg0, %arg1 : i32, i32
  }
}

</mosaic_0001>

<llo_original>
// kernel: tpu_custom_call.1
$region0: #{tpu_custom_call.1}
  #allocation0 [shape = 'u32[]', space=smem, size = 0x4, offset = 0x4, fixed_abs, tag = 'smem constant byte address 0x4 - core index']
  #allocation1 [shape = 'u32[144,128]{1,0:T(1,128)}', space=vmem, size = 0x12000, scoped, tag = 'internal scratch']
  %s0 = inlined_call_operand.hbm [shape: f32[256,8,128], index: 0, kind: input, shape index: {}]
  %s1 = inlined_call_operand.hbm [shape: f32[256,128], index: 1, kind: output, shape index: {}]
  %s2 = sld [smem:[#allocation0]]
  $region41: #{tpu_custom_call.1} parent=0
    _
  %s4 = ssub.s32 1, %s2
  %s5 = scalar_select 0, %s4, %s2
  $region1: #{tpu_custom_call.1} parent=0
    #allocation2 [shape = 'u8[1048576]{0}', space=vmem, size = 0x100000, scoped, tag = 'input window, operand 0']
    #allocation3 [shape = 's32[2]{0}', space=sflag, size = 0x8, scoped, tag = 'scoped memory for tpu_custom_call.1']
    #allocation4 [shape = 's32[2]{0}', space=sflag, size = 0x8, scoped, tag = 'scoped memory for tpu_custom_call.1']
    #allocation5 [shape = 'u8[131072]{0}', space=vmem, size = 0x20000, scoped, tag = 'output window, operand 0']
    %6 = vsyncpa [#allocation3], 0
    %s7 = scalar_lea.sflag [#allocation3], 1
    %8 = vsyncpa %s7, 0
    %9 = vsyncpa [#allocation4], 0
    %s10 = scalar_lea.sflag [#allocation4], 1
    %11 = vsyncpa %s10, 0
    loop: start=0, step=1, limit=4
    $region2: #{tpu_custom_call.1} parent=1 // loop_pre_header
      _
    $region3: #{tpu_custom_call.1} parent=1 // loop_header
      %s13 = sphi 0, %s17
      %p14 = scmp.ge.s32.totalorder %s13, 4
      %s20 = sphi 0, %s32
      %s21 = sphi 0, %s28
      %s22 = sphi 0, %s20
      %s23 = sphi 0, %s21
      %s24 = sphi 0, %s22
      %s25 = sphi 0, %s23
      %s37 = sphi 0, %s39
      %s40 = sphi 0, %s37
      %s41 = sphi 0, %s40
      %s57 = sphi 0, %s41
      %s65 = sphi 0, %s67
      %s68 = sphi 0, %s65
      %s69 = sphi 0, %s68
      %s85 = sphi 0, %s69
    $region4: #{tpu_custom_call.1} parent=1 // loop_header_branch
      %16 = sbr.rel (%p14) target = $region8
    $region5: #{tpu_custom_call.1} parent=1 // loop_body
      %s18 = ssub.s32 %s13, 1
      %s19 = ssub.s32 %s13, 2
      %s26 = sadd.s32 1, %s21
      %p27 = scmp.ge.s32.totalorder %s26, 1
      %s28 = scalar_select %p27, 0, %s26
      %s29 = sadd.s32 1, %s20
      %s30 = scalar_select %p27, %s29, %s20
      %p31 = scmp.ge.s32.totalorder %s30, 2
      %s32 = scalar_select %p31, 0, %s30
      %s33 = ssub.s32 %s20, %s32
      %s34 = ssub.s32 %s21, %s28
      %s35 = sor.u32 %s33, %s34
      %p36 = scmp.eq.s32.totalorder %s35, 0
      %s38 = sadd.s32 %s37, 1
      %s39 = scalar_select %p36, %s37, %s38
      %p42 = pneg %p36
      %p43 = scmp.eq.s32.totalorder %s13, 1
      %p44 = por %p42, %p43
      %p45 = scmp.ne.s32.totalorder %s37, %s40
      %p46 = scmp.eq.s32.totalorder %s13, 0
      %p47 = por %p45, %p46
      %p48 = scmp.ne.s32.totalorder %s37, %s40
      %p49 = scmp.eq.s32.totalorder %s18, 1
      %p50 = por %p48, %p49
      %p51 = scmp.ne.s32.totalorder %s40, %s41
      %p52 = scmp.eq.s32.totalorder %s18, 0
      %p53 = por %p51, %p52
      %p54 = scmp.ne.s32.totalorder %s40, %s41
      %p55 = scmp.eq.s32.totalorder %s19, 1
      %p56 = por %p54, %p55
      %p58 = scmp.ne.s32.totalorder %s41, %s57
      %p59 = scmp.eq.s32.totalorder %s19, 0
      %p60 = por %p58, %p59
      %s61 = ssub.s32 %s20, %s32
      %s62 = ssub.s32 %s21, %s28
      %s63 = sor.u32 %s61, %s62
      %p64 = scmp.eq.s32.totalorder %s63, 0
      %s66 = sadd.s32 %s65, 1
      %s67 = scalar_select %p64, %s65, %s66
      %p70 = pneg %p64
      %p71 = scmp.eq.s32.totalorder %s13, 1
      %p72 = por %p70, %p71
      %p73 = scmp.ne.s32.totalorder %s65, %s68
      %p74 = scmp.eq.s32.totalorder %s13, 0
      %p75 = por %p73, %p74
      %p76 = scmp.ne.s32.totalorder %s65, %s68
      %p77 = scmp.eq.s32.totalorder %s18, 1
      %p78 = por %p76, %p77
      %p79 = scmp.ne.s32.totalorder %s68, %s69
      %p80 = scmp.eq.s32.totalorder %s18, 0
      %p81 = por %p79, %p80
      %p82 = scmp.ne.s32.totalorder %s68, %s69
      %p83 = scmp.eq.s32.totalorder %s19, 1
      %p84 = por %p82, %p83
      %p86 = scmp.ne.s32.totalorder %s69, %s85
      %p87 = scmp.eq.s32.totalorder %s19, 0
      %p88 = por %p86, %p87
      %p89 = scmp.le.s32.totalorder 1, %s13
      %p90 = scmp.lt.s32.totalorder %s13, 3
      %p91 = pnand %p89, %p90
      %p92 = pneg %p91
      // Predicated region
      $region9: #{tpu_custom_call.1} parent=5 // pred_check
        _
      $region10: #{tpu_custom_call.1} parent=5 // pred_check_branch
        %94 = sbr.rel (%p91) target = $region12
      $region11: #{tpu_custom_call.1} parent=5 // pred_region
        %s95 = ssub.s32 %s13, 1
      $region12: #{tpu_custom_call.1} parent=5 // pred_fallthru
        _
      %p96 = scmp.lt.s32.totalorder %s13, 2
      // Predicated region
      $region13: #{tpu_custom_call.1} parent=5 // pred_check
        %p97 = pneg %p96
      $region14: #{tpu_custom_call.1} parent=5 // pred_check_branch
        %99 = sbr.rel (%p97) target = $region16
      $region15: #{tpu_custom_call.1} parent=5 // pred_region
        // Predicated region
        $region17: #{tpu_custom_call.1} parent=15 // pred_check
          %p100 = pneg %p47
        $region18: #{tpu_custom_call.1} parent=15 // pred_check_branch
          %102 = sbr.rel (%p100) target = $region20
        $region19: #{tpu_custom_call.1} parent=15 // pred_region
          %s103 = sand.u32 %s37, 1
          %s104 = scalar_lea.sflag [#allocation3], %s103
          %s105 = sand.u32 %s37, 1
          %s106 = smul.addr %s105, 1024
          %s107 = scalar_lea.vmem [#allocation2], %s106
          %s108 = smul.u32 128, %s20
          %s110 = ssub.s32 16384, 16384
          %111 = vsyncadd %s104, %s110
          %s112 = sadd.s32 %s21, %s108
          %s113 = smul.addr %s112, 128
          %s114 = scalar_lea.hbm %s0, %s113
          %s115 = sshll.u32 %s107, 4
          %s116 = int_to_ptr.vmem [resolvable:$true] %s115
          %121 = dma.hbm_to_vmem [thread:$0]  %s114, 16384, %s116, %s104, 128, 128, 8
        $region20: #{tpu_custom_call.1} parent=15 // pred_fallthru
          _
      $region16: #{tpu_custom_call.1} parent=5 // pred_fallthru
        _
      %p122 = scmp.le.s32.totalorder 1, %s13
      %p123 = scmp.lt.s32.totalorder %s13, 3
      %p124 = pnand %p122, %p123
      %p125 = pneg %p124
      // Predicated region
      $region21: #{tpu_custom_call.1} parent=5 // pred_check
        _
      $region22: #{tpu_custom_call.1} parent=5 // pred_check_branch
        %127 = sbr.rel (%p124) target = $region24
      $region23: #{tpu_custom_call.1} parent=5 // pred_region
        %s128 = ssub.s32 %s13, 1
        %s129 = sand.u32 %s40, 1
        %s130 = scalar_lea.sflag [#allocation3], %s129
        %s131 = sand.u32 %s40, 1
        %s132 = smul.addr %s131, 1024
        %s133 = scalar_lea.vmem [#allocation2], %s132
        // Predicated region
        $region25: #{tpu_custom_call.1} parent=23 // pred_check
          %p134 = pneg %p53
        $region26: #{tpu_custom_call.1} parent=23 // pred_check_branch
          %136 = sbr.rel (%p134) target = $region28
        $region27: #{tpu_custom_call.1} parent=23 // pred_region
          %137 = dma.done %s130, 16384
        $region28: #{tpu_custom_call.1} parent=23 // pred_fallthru
          _
        %s138 = sand.u32 %s40, 1
        %s139 = scalar_lea.sflag [#allocation3], %s138
        %s140 = sand.u32 %s40, 1
        %s141 = smul.addr %s140, 1024
        %s142 = scalar_lea.vmem [#allocation2], %s141
        %p143 = pneg %p53
        %p144 = pneg %p50
        %p145 = pneg %p81
        %p146 = pneg %p78
        %s147 = sand.u32 %s68, 1
        %s148 = scalar_lea.sflag [#allocation4], %s147
        %s149 = sand.u32 %s68, 1
        %s150 = smul.addr %s149, 128
        %s151 = scalar_lea.vmem [#allocation5], %s150
        %s152 = smul.u32 128, %s22
        %s153 = smul.u32 16, %s22
        %v154 = vld [vmem:[%s133] sm:$0x1]
        %v155 = vld [vmem:[%s133 + $0x8] sm:$0x1]
        %v156 = vld [vmem:[%s133 + $0x10] sm:$0x1]
        %v157 = vld [vmem:[%s133 + $0x18] sm:$0x1]
        %v158 = vld [vmem:[%s133 + $0x20] sm:$0x1]
        %v159 = vld [vmem:[%s133 + $0x28] sm:$0x1]
        %v160 = vld [vmem:[%s133 + $0x30] sm:$0x1]
        %v161 = vld [vmem:[%s133 + $0x38] sm:$0x1]
        %v162 = vld [vmem:[%s133 + $0x40] sm:$0x1]
        %v163 = vld [vmem:[%s133 + $0x48] sm:$0x1]
        %v164 = vld [vmem:[%s133 + $0x50] sm:$0x1]
        %v165 = vld [vmem:[%s133 + $0x58] sm:$0x1]
        %v166 = vld [vmem:[%s133 + $0x60] sm:$0x1]
        %v167 = vld [vmem:[%s133 + $0x68] sm:$0x1]
        %v168 = vld [vmem:[%s133 + $0x70] sm:$0x1]
        %v169 = vld [vmem:[%s133 + $0x78] sm:$0x1]
        %v170 = vld [vmem:[%s133 + $0x80] sm:$0x1]
        %v171 = vld [vmem:[%s133 + $0x88] sm:$0x1]
        %v172 = vld [vmem:[%s133 + $0x90] sm:$0x1]
        %v173 = vld [vmem:[%s133 + $0x98] sm:$0x1]
        %v174 = vld [vmem:[%s133 + $0xa0] sm:$0x1]
        %v175 = vld [vmem:[%s133 + $0xa8] sm:$0x1]
        %v176 = vld [vmem:[%s133 + $0xb0] sm:$0x1]
        %v177 = vld [vmem:[%s133 + $0xb8] sm:$0x1]
        %v178 = vld [vmem:[%s133 + $0xc0] sm:$0x1]
        %v179 = vld [vmem:[%s133 + $0xc8] sm:$0x1]
        %v180 = vld [vmem:[%s133 + $0xd0] sm:$0x1]
        %v181 = vld [vmem:[%s133 + $0xd8] sm:$0x1]
        %v182 = vld [vmem:[%s133 + $0xe0] sm:$0x1]
        %v183 = vld [vmem:[%s133 + $0xe8] sm:$0x1]
        %v184 = vld [vmem:[%s133 + $0xf0] sm:$0x1]
        %v185 = vld [vmem:[%s133 + $0xf8] sm:$0x1]
        %v186 = vld [vmem:[%s133 + $0x100] sm:$0x1]
        %v187 = vld [vmem:[%s133 + $0x108] sm:$0x1]
        %v188 = vld [vmem:[%s133 + $0x110] sm:$0x1]
        %v189 = vld [vmem:[%s133 + $0x118] sm:$0x1]
        %v190 = vld [vmem:[%s133 + $0x120] sm:$0x1]
        %v191 = vld [vmem:[%s133 + $0x128] sm:$0x1]
        %v192 = vld [vmem:[%s133 + $0x130] sm:$0x1]
        %v193 = vld [vmem:[%s133 + $0x138] sm:$0x1]
        %v194 = vld [vmem:[%s133 + $0x140] sm:$0x1]
        %v195 = vld [vmem:[%s133 + $0x148] sm:$0x1]
        %v196 = vld [vmem:[%s133 + $0x150] sm:$0x1]
        %v197 = vld [vmem:[%s133 + $0x158] sm:$0x1]
        %v198 = vld [vmem:[%s133 + $0x160] sm:$0x1]
        %v199 = vld [vmem:[%s133 + $0x168] sm:$0x1]
        %v200 = vld [vmem:[%s133 + $0x170] sm:$0x1]
        %v201 = vld [vmem:[%s133 + $0x178] sm:$0x1]
        %v202 = vld [vmem:[%s133 + $0x180] sm:$0x1]
        %v203 = vld [vmem:[%s133 + $0x188] sm:$0x1]
        %v204 = vld [vmem:[%s133 + $0x190] sm:$0x1]
        %v205 = vld [vmem:[%s133 + $0x198] sm:$0x1]
        %v206 = vld [vmem:[%s133 + $0x1a0] sm:$0x1]
        %v207 = vld [vmem:[%s133 + $0x1a8] sm:$0x1]
        %v208 = vld [vmem:[%s133 + $0x1b0] sm:$0x1]
        %v209 = vld [vmem:[%s133 + $0x1b8] sm:$0x1]
        %v210 = vld [vmem:[%s133 + $0x1c0] sm:$0x1]
        %v211 = vld [vmem:[%s133 + $0x1c8] sm:$0x1]
        %v212 = vld [vmem:[%s133 + $0x1d0] sm:$0x1]
        %v213 = vld [vmem:[%s133 + $0x1d8] sm:$0x1]
        %v214 = vld [vmem:[%s133 + $0x1e0] sm:$0x1]
        %v215 = vld [vmem:[%s133 + $0x1e8] sm:$0x1]
        %v216 = vld [vmem:[%s133 + $0x1f0] sm:$0x1]
        %v217 = vld [vmem:[%s133 + $0x1f8] sm:$0x1]
        %v218 = vld [vmem:[%s133 + $0x200] sm:$0x1]
        %v219 = vld [vmem:[%s133 + $0x208] sm:$0x1]
        %v220 = vld [vmem:[%s133 + $0x210] sm:$0x1]
        %v221 = vld [vmem:[%s133 + $0x218] sm:$0x1]
        %v222 = vld [vmem:[%s133 + $0x220] sm:$0x1]
        %v223 = vld [vmem:[%s133 + $0x228] sm:$0x1]
        %v224 = vld [vmem:[%s133 + $0x230] sm:$0x1]
        %v225 = vld [vmem:[%s133 + $0x238] sm:$0x1]
        %v226 = vld [vmem:[%s133 + $0x240] sm:$0x1]
        %v227 = vld [vmem:[%s133 + $0x248] sm:$0x1]
        %v228 = vld [vmem:[%s133 + $0x250] sm:$0x1]
        %v229 = vld [vmem:[%s133 + $0x258] sm:$0x1]
        %v230 = vld [vmem:[%s133 + $0x260] sm:$0x1]
        %v231 = vld [vmem:[%s133 + $0x268] sm:$0x1]
        %v232 = vld [vmem:[%s133 + $0x270] sm:$0x1]
        %v233 = vld [vmem:[%s133 + $0x278] sm:$0x1]
        %v234 = vld [vmem:[%s133 + $0x280] sm:$0x1]
        %v235 = vld [vmem:[%s133 + $0x288] sm:$0x1]
        %v236 = vld [vmem:[%s133 + $0x290] sm:$0x1]
        %v237 = vld [vmem:[%s133 + $0x298] sm:$0x1]
        %v238 = vld [vmem:[%s133 + $0x2a0] sm:$0x1]
        %v239 = vld [vmem:[%s133 + $0x2a8] sm:$0x1]
        %v240 = vld [vmem:[%s133 + $0x2b0] sm:$0x1]
        %v241 = vld [vmem:[%s133 + $0x2b8] sm:$0x1]
        %v242 = vld [vmem:[%s133 + $0x2c0] sm:$0x1]
        %v243 = vld [vmem:[%s133 + $0x2c8] sm:$0x1]
        %v244 = vld [vmem:[%s133 + $0x2d0] sm:$0x1]
        %v245 = vld [vmem:[%s133 + $0x2d8] sm:$0x1]
        %v246 = vld [vmem:[%s133 + $0x2e0] sm:$0x1]
        %v247 = vld [vmem:[%s133 + $0x2e8] sm:$0x1]
        %v248 = vld [vmem:[%s133 + $0x2f0] sm:$0x1]
        %v249 = vld [vmem:[%s133 + $0x2f8] sm:$0x1]
        %v250 = vld [vmem:[%s133 + $0x300] sm:$0x1]
        %v251 = vld [vmem:[%s133 + $0x308] sm:$0x1]
        %v252 = vld [vmem:[%s133 + $0x310] sm:$0x1]
        %v253 = vld [vmem:[%s133 + $0x318] sm:$0x1]
        %v254 = vld [vmem:[%s133 + $0x320] sm:$0x1]
        %v255 = vld [vmem:[%s133 + $0x328] sm:$0x1]
        %v256 = vld [vmem:[%s133 + $0x330] sm:$0x1]
        %v257 = vld [vmem:[%s133 + $0x338] sm:$0x1]
        %v258 = vld [vmem:[%s133 + $0x340] sm:$0x1]
        %v259 = vld [vmem:[%s133 + $0x348] sm:$0x1]
        %v260 = vld [vmem:[%s133 + $0x350] sm:$0x1]
        %v261 = vld [vmem:[%s133 + $0x358] sm:$0x1]
        %v262 = vld [vmem:[%s133 + $0x360] sm:$0x1]
        %v263 = vld [vmem:[%s133 + $0x368] sm:$0x1]
        %v264 = vld [vmem:[%s133 + $0x370] sm:$0x1]
        %v265 = vld [vmem:[%s133 + $0x378] sm:$0x1]
        %v266 = vld [vmem:[%s133 + $0x380] sm:$0x1]
        %v267 = vld [vmem:[%s133 + $0x388] sm:$0x1]
        %v268 = vld [vmem:[%s133 + $0x390] sm:$0x1]
        %v269 = vld [vmem:[%s133 + $0x398] sm:$0x1]
        %v270 = vld [vmem:[%s133 + $0x3a0] sm:$0x1]
        %v271 = vld [vmem:[%s133 + $0x3a8] sm:$0x1]
        %v272 = vld [vmem:[%s133 + $0x3b0] sm:$0x1]
        %v273 = vld [vmem:[%s133 + $0x3b8] sm:$0x1]
        %v274 = vld [vmem:[%s133 + $0x3c0] sm:$0x1]
        %v275 = vld [vmem:[%s133 + $0x3c8] sm:$0x1]
        %v276 = vld [vmem:[%s133 + $0x3d0] sm:$0x1]
        %v277 = vld [vmem:[%s133 + $0x3d8] sm:$0x1]
        %v278 = vld [vmem:[%s133 + $0x3e0] sm:$0x1]
        %v279 = vld [vmem:[%s133 + $0x3e8] sm:$0x1]
        %v280 = vld [vmem:[%s133 + $0x3f0] sm:$0x1]
        %v281 = vld [vmem:[%s133 + $0x3f8] sm:$0x1]
        %v282 = vld [vmem:[%s133 + $0x1] sm:$0x1]
        %v283 = vld [vmem:[%s133 + $0x9] sm:$0x1]
        %v284 = vld [vmem:[%s133 + $0x11] sm:$0x1]
        %v285 = vld [vmem:[%s133 + $0x19] sm:$0x1]
        %v286 = vld [vmem:[%s133 + $0x21] sm:$0x1]
        %v287 = vld [vmem:[%s133 + $0x29] sm:$0x1]
        %v288 = vld [vmem:[%s133 + $0x31] sm:$0x1]
        %v289 = vld [vmem:[%s133 + $0x39] sm:$0x1]
        %v290 = vld [vmem:[%s133 + $0x41] sm:$0x1]
        %v291 = vld [vmem:[%s133 + $0x49] sm:$0x1]
        %v292 = vld [vmem:[%s133 + $0x51] sm:$0x1]
        %v293 = vld [vmem:[%s133 + $0x59] sm:$0x1]
        %v294 = vld [vmem:[%s133 + $0x61] sm:$0x1]
        %v295 = vld [vmem:[%s133 + $0x69] sm:$0x1]
        %v296 = vld [vmem:[%s133 + $0x71] sm:$0x1]
        %v297 = vld [vmem:[%s133 + $0x79] sm:$0x1]
        %v298 = vld [vmem:[%s133 + $0x81] sm:$0x1]
        %v299 = vld [vmem:[%s133 + $0x89] sm:$0x1]
        %v300 = vld [vmem:[%s133 + $0x91] sm:$0x1]
        %v301 = vld [vmem:[%s133 + $0x99] sm:$0x1]
        %v302 = vld [vmem:[%s133 + $0xa1] sm:$0x1]
        %v303 = vld [vmem:[%s133 + $0xa9] sm:$0x1]
        %v304 = vld [vmem:[%s133 + $0xb1] sm:$0x1]
        %v305 = vld [vmem:[%s133 + $0xb9] sm:$0x1]
        %v306 = vld [vmem:[%s133 + $0xc1] sm:$0x1]
        %v307 = vld [vmem:[%s133 + $0xc9] sm:$0x1]
        %v308 = vld [vmem:[%s133 + $0xd1] sm:$0x1]
        %v309 = vld [vmem:[%s133 + $0xd9] sm:$0x1]
        %v310 = vld [vmem:[%s133 + $0xe1] sm:$0x1]
        %v311 = vld [vmem:[%s133 + $0xe9] sm:$0x1]
        %v312 = vld [vmem:[%s133 + $0xf1] sm:$0x1]
        %v313 = vld [vmem:[%s133 + $0xf9] sm:$0x1]
        %v314 = vld [vmem:[%s133 + $0x101] sm:$0x1]
        %v315 = vld [vmem:[%s133 + $0x109] sm:$0x1]
        %v316 = vld [vmem:[%s133 + $0x111] sm:$0x1]
        %v317 = vld [vmem:[%s133 + $0x119] sm:$0x1]
        %v318 = vld [vmem:[%s133 + $0x121] sm:$0x1]
        %v319 = vld [vmem:[%s133 + $0x129] sm:$0x1]
        %v320 = vld [vmem:[%s133 + $0x131] sm:$0x1]
        %v321 = vld [vmem:[%s133 + $0x139] sm:$0x1]
        %v322 = vld [vmem:[%s133 + $0x141] sm:$0x1]
        %v323 = vld [vmem:[%s133 + $0x149] sm:$0x1]
        %v324 = vld [vmem:[%s133 + $0x151] sm:$0x1]
        %v325 = vld [vmem:[%s133 + $0x159] sm:$0x1]
        %v326 = vld [vmem:[%s133 + $0x161] sm:$0x1]
        %v327 = vld [vmem:[%s133 + $0x169] sm:$0x1]
        %v328 = vld [vmem:[%s133 + $0x171] sm:$0x1]
        %v329 = vld [vmem:[%s133 + $0x179] sm:$0x1]
        %v330 = vld [vmem:[%s133 + $0x181] sm:$0x1]
        %v331 = vld [vmem:[%s133 + $0x189] sm:$0x1]
        %v332 = vld [vmem:[%s133 + $0x191] sm:$0x1]
        %v333 = vld [vmem:[%s133 + $0x199] sm:$0x1]
        %v334 = vld [vmem:[%s133 + $0x1a1] sm:$0x1]
        %v335 = vld [vmem:[%s133 + $0x1a9] sm:$0x1]
        %v336 = vld [vmem:[%s133 + $0x1b1] sm:$0x1]
        %v337 = vld [vmem:[%s133 + $0x1b9] sm:$0x1]
        %v338 = vld [vmem:[%s133 + $0x1c1] sm:$0x1]
        %v339 = vld [vmem:[%s133 + $0x1c9] sm:$0x1]
        %v340 = vld [vmem:[%s133 + $0x1d1] sm:$0x1]
        %v341 = vld [vmem:[%s133 + $0x1d9] sm:$0x1]
        %v342 = vld [vmem:[%s133 + $0x1e1] sm:$0x1]
        %v343 = vld [vmem:[%s133 + $0x1e9] sm:$0x1]
        %v344 = vld [vmem:[%s133 + $0x1f1] sm:$0x1]
        %v345 = vld [vmem:[%s133 + $0x1f9] sm:$0x1]
        %v346 = vld [vmem:[%s133 + $0x201] sm:$0x1]
        %v347 = vld [vmem:[%s133 + $0x209] sm:$0x1]
        %v348 = vld [vmem:[%s133 + $0x211] sm:$0x1]
        %v349 = vld [vmem:[%s133 + $0x219] sm:$0x1]
        %v350 = vld [vmem:[%s133 + $0x221] sm:$0x1]
        %v351 = vld [vmem:[%s133 + $0x229] sm:$0x1]
        %v352 = vld [vmem:[%s133 + $0x231] sm:$0x1]
        %v353 = vld [vmem:[%s133 + $0x239] sm:$0x1]
        %v354 = vld [vmem:[%s133 + $0x241] sm:$0x1]
        %v355 = vld [vmem:[%s133 + $0x249] sm:$0x1]
        %v356 = vld [vmem:[%s133 + $0x251] sm:$0x1]
        %v357 = vld [vmem:[%s133 + $0x259] sm:$0x1]
        %v358 = vld [vmem:[%s133 + $0x261] sm:$0x1]
        %v359 = vld [vmem:[%s133 + $0x269] sm:$0x1]
        %v360 = vld [vmem:[%s133 + $0x271] sm:$0x1]
        %v361 = vld [vmem:[%s133 + $0x279] sm:$0x1]
        %v362 = vld [vmem:[%s133 + $0x281] sm:$0x1]
        %v363 = vld [vmem:[%s133 + $0x289] sm:$0x1]
        %v364 = vld [vmem:[%s133 + $0x291] sm:$0x1]
        %v365 = vld [vmem:[%s133 + $0x299] sm:$0x1]
        %v366 = vld [vmem:[%s133 + $0x2a1] sm:$0x1]
        %v367 = vld [vmem:[%s133 + $0x2a9] sm:$0x1]
        %v368 = vld [vmem:[%s133 + $0x2b1] sm:$0x1]
        %v369 = vld [vmem:[%s133 + $0x2b9] sm:$0x1]
        %v370 = vld [vmem:[%s133 + $0x2c1] sm:$0x1]
        %v371 = vld [vmem:[%s133 + $0x2c9] sm:$0x1]
        %v372 = vld [vmem:[%s133 + $0x2d1] sm:$0x1]
        %v373 = vld [vmem:[%s133 + $0x2d9] sm:$0x1]
        %v374 = vld [vmem:[%s133 + $0x2e1] sm:$0x1]
        %v375 = vld [vmem:[%s133 + $0x2e9] sm:$0x1]
        %v376 = vld [vmem:[%s133 + $0x2f1] sm:$0x1]
        %v377 = vld [vmem:[%s133 + $0x2f9] sm:$0x1]
        %v378 = vld [vmem:[%s133 + $0x301] sm:$0x1]
        %v379 = vld [vmem:[%s133 + $0x309] sm:$0x1]
        %v380 = vld [vmem:[%s133 + $0x311] sm:$0x1]
        %v381 = vld [vmem:[%s133 + $0x319] sm:$0x1]
        %v382 = vld [vmem:[%s133 + $0x321] sm:$0x1]
        %v383 = vld [vmem:[%s133 + $0x329] sm:$0x1]
        %v384 = vld [vmem:[%s133 + $0x331] sm:$0x1]
        %v385 = vld [vmem:[%s133 + $0x339] sm:$0x1]
        %v386 = vld [vmem:[%s133 + $0x341] sm:$0x1]
        %v387 = vld [vmem:[%s133 + $0x349] sm:$0x1]
        %v388 = vld [vmem:[%s133 + $0x351] sm:$0x1]
        %v389 = vld [vmem:[%s133 + $0x359] sm:$0x1]
        %v390 = vld [vmem:[%s133 + $0x361] sm:$0x1]
        %v391 = vld [vmem:[%s133 + $0x369] sm:$0x1]
        %v392 = vld [vmem:[%s133 + $0x371] sm:$0x1]
        %v393 = vld [vmem:[%s133 + $0x379] sm:$0x1]
        %v394 = vld [vmem:[%s133 + $0x381] sm:$0x1]
        %v395 = vld [vmem:[%s133 + $0x389] sm:$0x1]
        %v396 = vld [vmem:[%s133 + $0x391] sm:$0x1]
        %v397 = vld [vmem:[%s133 + $0x399] sm:$0x1]
        %v398 = vld [vmem:[%s133 + $0x3a1] sm:$0x1]
        %v399 = vld [vmem:[%s133 + $0x3a9] sm:$0x1]
        %v400 = vld [vmem:[%s133 + $0x3b1] sm:$0x1]
        %v401 = vld [vmem:[%s133 + $0x3b9] sm:$0x1]
        %v402 = vld [vmem:[%s133 + $0x3c1] sm:$0x1]
        %v403 = vld [vmem:[%s133 + $0x3c9] sm:$0x1]
        %v404 = vld [vmem:[%s133 + $0x3d1] sm:$0x1]
        %v405 = vld [vmem:[%s133 + $0x3d9] sm:$0x1]
        %v406 = vld [vmem:[%s133 + $0x3e1] sm:$0x1]
        %v407 = vld [vmem:[%s133 + $0x3e9] sm:$0x1]
        %v408 = vld [vmem:[%s133 + $0x3f1] sm:$0x1]
        %v409 = vld [vmem:[%s133 + $0x3f9] sm:$0x1]
        %v410 = vadd.f32 %v154, %v282
        %v411 = vadd.f32 %v155, %v283
        %v412 = vadd.f32 %v156, %v284
        %v413 = vadd.f32 %v157, %v285
        %v414 = vadd.f32 %v158, %v286
        %v415 = vadd.f32 %v159, %v287
        %v416 = vadd.f32 %v160, %v288
        %v417 = vadd.f32 %v161, %v289
        %v418 = vadd.f32 %v162, %v290
        %v419 = vadd.f32 %v163, %v291
        %v420 = vadd.f32 %v164, %v292
        %v421 = vadd.f32 %v165, %v293
        %v422 = vadd.f32 %v166, %v294
        %v423 = vadd.f32 %v167, %v295
        %v424 = vadd.f32 %v168, %v296
        %v425 = vadd.f32 %v169, %v297
        %v426 = vadd.f32 %v170, %v298
        %v427 = vadd.f32 %v171, %v299
        %v428 = vadd.f32 %v172, %v300
        %v429 = vadd.f32 %v173, %v301
        %v430 = vadd.f32 %v174, %v302
        %v431 = vadd.f32 %v175, %v303
        %v432 = vadd.f32 %v176, %v304
        %v433 = vadd.f32 %v177, %v305
        %v434 = vadd.f32 %v178, %v306
        %v435 = vadd.f32 %v179, %v307
        %v436 = vadd.f32 %v180, %v308
        %v437 = vadd.f32 %v181, %v309
        %v438 = vadd.f32 %v182, %v310
        %v439 = vadd.f32 %v183, %v311
        %v440 = vadd.f32 %v184, %v312
        %v441 = vadd.f32 %v185, %v313
        %v442 = vadd.f32 %v186, %v314
        %v443 = vadd.f32 %v187, %v315
        %v444 = vadd.f32 %v188, %v316
        %v445 = vadd.f32 %v189, %v317
        %v446 = vadd.f32 %v190, %v318
        %v447 = vadd.f32 %v191, %v319
        %v448 = vadd.f32 %v192, %v320
        %v449 = vadd.f32 %v193, %v321
        %v450 = vadd.f32 %v194, %v322
        %v451 = vadd.f32 %v195, %v323
        %v452 = vadd.f32 %v196, %v324
        %v453 = vadd.f32 %v197, %v325
        %v454 = vadd.f32 %v198, %v326
        %v455 = vadd.f32 %v199, %v327
        %v456 = vadd.f32 %v200, %v328
        %v457 = vadd.f32 %v201, %v329
        %v458 = vadd.f32 %v202, %v330
        %v459 = vadd.f32 %v203, %v331
        %v460 = vadd.f32 %v204, %v332
        %v461 = vadd.f32 %v205, %v333
        %v462 = vadd.f32 %v206, %v334
        %v463 = vadd.f32 %v207, %v335
        %v464 = vadd.f32 %v208, %v336
        %v465 = vadd.f32 %v209, %v337
        %v466 = vadd.f32 %v210, %v338
        %v467 = vadd.f32 %v211, %v339
        %v468 = vadd.f32 %v212, %v340
        %v469 = vadd.f32 %v213, %v341
        %v470 = vadd.f32 %v214, %v342
        %v471 = vadd.f32 %v215, %v343
        %v472 = vadd.f32 %v216, %v344
        %v473 = vadd.f32 %v217, %v345
        %v474 = vadd.f32 %v218, %v346
        %v475 = vadd.f32 %v219, %v347
        %v476 = vadd.f32 %v220, %v348
        %v477 = vadd.f32 %v221, %v349
        %v478 = vadd.f32 %v222, %v350
        %v479 = vadd.f32 %v223, %v351
        %v480 = vadd.f32 %v224, %v352
        %v481 = vadd.f32 %v225, %v353
        %v482 = vadd.f32 %v226, %v354
        %v483 = vadd.f32 %v227, %v355
        %v484 = vadd.f32 %v228, %v356
        %v485 = vadd.f32 %v229, %v357
        %v486 = vadd.f32 %v230, %v358
        %v487 = vadd.f32 %v231, %v359
        %v488 = vadd.f32 %v232, %v360
        %v489 = vadd.f32 %v233, %v361
        %v490 = vadd.f32 %v234, %v362
        %v491 = vadd.f32 %v235, %v363
        %v492 = vadd.f32 %v236, %v364
        %v493 = vadd.f32 %v237, %v365
        %v494 = vadd.f32 %v238, %v366
        %v495 = vadd.f32 %v239, %v367
        %v496 = vadd.f32 %v240, %v368
        %v497 = vadd.f32 %v241, %v369
        %v498 = vadd.f32 %v242, %v370
        %v499 = vadd.f32 %v243, %v371
        %v500 = vadd.f32 %v244, %v372
        %v501 = vadd.f32 %v245, %v373
        %v502 = vadd.f32 %v246, %v374
        %v503 = vadd.f32 %v247, %v375
        %v504 = vadd.f32 %v248, %v376
        %v505 = vadd.f32 %v249, %v377
        %v506 = vadd.f32 %v250, %v378
        %v507 = vadd.f32 %v251, %v379
        %v508 = vadd.f32 %v252, %v380
        %v509 = vadd.f32 %v253, %v381
        %v510 = vadd.f32 %v254, %v382
        %v511 = vadd.f32 %v255, %v383
        %v512 = vadd.f32 %v256, %v384
        %v513 = vadd.f32 %v257, %v385
        %v514 = vadd.f32 %v258, %v386
        %v515 = vadd.f32 %v259, %v387
        %v516 = vadd.f32 %v260, %v388
        %v517 = vadd.f32 %v261, %v389
        %v518 = vadd.f32 %v262, %v390
        %v519 = vadd.f32 %v263, %v391
        %v520 = vadd.f32 %v264, %v392
        %v521 = vadd.f32 %v265, %v393
        %v522 = vadd.f32 %v266, %v394
        %v523 = vadd.f32 %v267, %v395
        %v524 = vadd.f32 %v268, %v396
        %v525 = vadd.f32 %v269, %v397
        %v526 = vadd.f32 %v270, %v398
        %v527 = vadd.f32 %v271, %v399
        %v528 = vadd.f32 %v272, %v400
        %v529 = vadd.f32 %v273, %v401
        %v530 = vadd.f32 %v274, %v402
        %v531 = vadd.f32 %v275, %v403
        %v532 = vadd.f32 %v276, %v404
        %v533 = vadd.f32 %v277, %v405
        %v534 = vadd.f32 %v278, %v406
        %v535 = vadd.f32 %v279, %v407
        %v536 = vadd.f32 %v280, %v408
        %v537 = vadd.f32 %v281, %v409
        %v538 = vld [vmem:[%s133 + $0x2] sm:$0x1]
        %v539 = vld [vmem:[%s133 + $0xa] sm:$0x1]
        %v540 = vld [vmem:[%s133 + $0x12] sm:$0x1]
        %v541 = vld [vmem:[%s133 + $0x1a] sm:$0x1]
        %v542 = vld [vmem:[%s133 + $0x22] sm:$0x1]
        %v543 = vld [vmem:[%s133 + $0x2a] sm:$0x1]
        %v544 = vld [vmem:[%s133 + $0x32] sm:$0x1]
        %v545 = vld [vmem:[%s133 + $0x3a] sm:$0x1]
        %v546 = vld [vmem:[%s133 + $0x42] sm:$0x1]
        %v547 = vld [vmem:[%s133 + $0x4a] sm:$0x1]
        %v548 = vld [vmem:[%s133 + $0x52] sm:$0x1]
        %v549 = vld [vmem:[%s133 + $0x5a] sm:$0x1]
        %v550 = vld [vmem:[%s133 + $0x62] sm:$0x1]
        %v551 = vld [vmem:[%s133 + $0x6a] sm:$0x1]
        %v552 = vld [vmem:[%s133 + $0x72] sm:$0x1]
        %v553 = vld [vmem:[%s133 + $0x7a] sm:$0x1]
        %v554 = vld [vmem:[%s133 + $0x82] sm:$0x1]
        %v555 = vld [vmem:[%s133 + $0x8a] sm:$0x1]
        %v556 = vld [vmem:[%s133 + $0x92] sm:$0x1]
        %v557 = vld [vmem:[%s133 + $0x9a] sm:$0x1]
        %v558 = vld [vmem:[%s133 + $0xa2] sm:$0x1]
        %v559 = vld [vmem:[%s133 + $0xaa] sm:$0x1]
        %v560 = vld [vmem:[%s133 + $0xb2] sm:$0x1]
        %v561 = vld [vmem:[%s133 + $0xba] sm:$0x1]
        %v562 = vld [vmem:[%s133 + $0xc2] sm:$0x1]
        %v563 = vld [vmem:[%s133 + $0xca] sm:$0x1]
        %v564 = vld [vmem:[%s133 + $0xd2] sm:$0x1]
        %v565 = vld [vmem:[%s133 + $0xda] sm:$0x1]
        %v566 = vld [vmem:[%s133 + $0xe2] sm:$0x1]
        %v567 = vld [vmem:[%s133 + $0xea] sm:$0x1]
        %v568 = vld [vmem:[%s133 + $0xf2] sm:$0x1]
        %v569 = vld [vmem:[%s133 + $0xfa] sm:$0x1]
        %v570 = vld [vmem:[%s133 + $0x102] sm:$0x1]
        %v571 = vld [vmem:[%s133 + $0x10a] sm:$0x1]
        %v572 = vld [vmem:[%s133 + $0x112] sm:$0x1]
        %v573 = vld [vmem:[%s133 + $0x11a] sm:$0x1]
        %v574 = vld [vmem:[%s133 + $0x122] sm:$0x1]
        %v575 = vld [vmem:[%s133 + $0x12a] sm:$0x1]
        %v576 = vld [vmem:[%s133 + $0x132] sm:$0x1]
        %v577 = vld [vmem:[%s133 + $0x13a] sm:$0x1]
        %v578 = vld [vmem:[%s133 + $0x142] sm:$0x1]
        %v579 = vld [vmem:[%s133 + $0x14a] sm:$0x1]
        %v580 = vld [vmem:[%s133 + $0x152] sm:$0x1]
        %v581 = vld [vmem:[%s133 + $0x15a] sm:$0x1]
        %v582 = vld [vmem:[%s133 + $0x162] sm:$0x1]
        %v583 = vld [vmem:[%s133 + $0x16a] sm:$0x1]
        %v584 = vld [vmem:[%s133 + $0x172] sm:$0x1]
        %v585 = vld [vmem:[%s133 + $0x17a] sm:$0x1]
        %v586 = vld [vmem:[%s133 + $0x182] sm:$0x1]
        %v587 = vld [vmem:[%s133 + $0x18a] sm:$0x1]
        %v588 = vld [vmem:[%s133 + $0x192] sm:$0x1]
        %v589 = vld [vmem:[%s133 + $0x19a] sm:$0x1]
        %v590 = vld [vmem:[%s133 + $0x1a2] sm:$0x1]
        %v591 = vld [vmem:[%s133 + $0x1aa] sm:$0x1]
        %v592 = vld [vmem:[%s133 + $0x1b2] sm:$0x1]
        %v593 = vld [vmem:[%s133 + $0x1ba] sm:$0x1]
        %v594 = vld [vmem:[%s133 + $0x1c2] sm:$0x1]
        %v595 = vld [vmem:[%s133 + $0x1ca] sm:$0x1]
        %v596 = vld [vmem:[%s133 + $0x1d2] sm:$0x1]
        %v597 = vld [vmem:[%s133 + $0x1da] sm:$0x1]
        %v598 = vld [vmem:[%s133 + $0x1e2] sm:$0x1]
        %v599 = vld [vmem:[%s133 + $0x1ea] sm:$0x1]
        %v600 = vld [vmem:[%s133 + $0x1f2] sm:$0x1]
        %v601 = vld [vmem:[%s133 + $0x1fa] sm:$0x1]
        %v602 = vld [vmem:[%s133 + $0x202] sm:$0x1]
        %v603 = vld [vmem:[%s133 + $0x20a] sm:$0x1]
        %v604 = vld [vmem:[%s133 + $0x212] sm:$0x1]
        %v605 = vld [vmem:[%s133 + $0x21a] sm:$0x1]
        %v606 = vld [vmem:[%s133 + $0x222] sm:$0x1]
        %v607 = vld [vmem:[%s133 + $0x22a] sm:$0x1]
        %v608 = vld [vmem:[%s133 + $0x232] sm:$0x1]
        %v609 = vld [vmem:[%s133 + $0x23a] sm:$0x1]
        %v610 = vld [vmem:[%s133 + $0x242] sm:$0x1]
        %v611 = vld [vmem:[%s133 + $0x24a] sm:$0x1]
        %v612 = vld [vmem:[%s133 + $0x252] sm:$0x1]
        %v613 = vld [vmem:[%s133 + $0x25a] sm:$0x1]
        %v614 = vld [vmem:[%s133 + $0x262] sm:$0x1]
        %v615 = vld [vmem:[%s133 + $0x26a] sm:$0x1]
        %v616 = vld [vmem:[%s133 + $0x272] sm:$0x1]
        %v617 = vld [vmem:[%s133 + $0x27a] sm:$0x1]
        %v618 = vld [vmem:[%s133 + $0x282] sm:$0x1]
        %v619 = vld [vmem:[%s133 + $0x28a] sm:$0x1]
        %v620 = vld [vmem:[%s133 + $0x292] sm:$0x1]
        %v621 = vld [vmem:[%s133 + $0x29a] sm:$0x1]
        %v622 = vld [vmem:[%s133 + $0x2a2] sm:$0x1]
        %v623 = vld [vmem:[%s133 + $0x2aa] sm:$0x1]
        %v624 = vld [vmem:[%s133 + $0x2b2] sm:$0x1]
        %v625 = vld [vmem:[%s133 + $0x2ba] sm:$0x1]
        %v626 = vld [vmem:[%s133 + $0x2c2] sm:$0x1]
        %v627 = vld [vmem:[%s133 + $0x2ca] sm:$0x1]
        %v628 = vld [vmem:[%s133 + $0x2d2] sm:$0x1]
        %v629 = vld [vmem:[%s133 + $0x2da] sm:$0x1]
        %v630 = vld [vmem:[%s133 + $0x2e2] sm:$0x1]
        %v631 = vld [vmem:[%s133 + $0x2ea] sm:$0x1]
        %v632 = vld [vmem:[%s133 + $0x2f2] sm:$0x1]
        %v633 = vld [vmem:[%s133 + $0x2fa] sm:$0x1]
        %v634 = vld [vmem:[%s133 + $0x302] sm:$0x1]
        %v635 = vld [vmem:[%s133 + $0x30a] sm:$0x1]
        %v636 = vld [vmem:[%s133 + $0x312] sm:$0x1]
        %v637 = vld [vmem:[%s133 + $0x31a] sm:$0x1]
        %v638 = vld [vmem:[%s133 + $0x322] sm:$0x1]
        %v639 = vld [vmem:[%s133 + $0x32a] sm:$0x1]
        %v640 = vld [vmem:[%s133 + $0x332] sm:$0x1]
        %v641 = vld [vmem:[%s133 + $0x33a] sm:$0x1]
        %v642 = vld [vmem:[%s133 + $0x342] sm:$0x1]
        %v643 = vld [vmem:[%s133 + $0x34a] sm:$0x1]
        %v644 = vld [vmem:[%s133 + $0x352] sm:$0x1]
        %v645 = vld [vmem:[%s133 + $0x35a] sm:$0x1]
        %v646 = vld [vmem:[%s133 + $0x362] sm:$0x1]
        %v647 = vld [vmem:[%s133 + $0x36a] sm:$0x1]
        %v648 = vld [vmem:[%s133 + $0x372] sm:$0x1]
        %v649 = vld [vmem:[%s133 + $0x37a] sm:$0x1]
        %v650 = vld [vmem:[%s133 + $0x382] sm:$0x1]
        %v651 = vld [vmem:[%s133 + $0x38a] sm:$0x1]
        %v652 = vld [vmem:[%s133 + $0x392] sm:$0x1]
        %v653 = vld [vmem:[%s133 + $0x39a] sm:$0x1]
        %v654 = vld [vmem:[%s133 + $0x3a2] sm:$0x1]
        %v655 = vld [vmem:[%s133 + $0x3aa] sm:$0x1]
        %v656 = vld [vmem:[%s133 + $0x3b2] sm:$0x1]
        %v657 = vld [vmem:[%s133 + $0x3ba] sm:$0x1]
        %v658 = vld [vmem:[%s133 + $0x3c2] sm:$0x1]
        %v659 = vld [vmem:[%s133 + $0x3ca] sm:$0x1]
        %v660 = vld [vmem:[%s133 + $0x3d2] sm:$0x1]
        %v661 = vld [vmem:[%s133 + $0x3da] sm:$0x1]
        %v662 = vld [vmem:[%s133 + $0x3e2] sm:$0x1]
        %v663 = vld [vmem:[%s133 + $0x3ea] sm:$0x1]
        %v664 = vld [vmem:[%s133 + $0x3f2] sm:$0x1]
        %v665 = vld [vmem:[%s133 + $0x3fa] sm:$0x1]
        %v666 = vadd.f32 %v410, %v538
        %v667 = vadd.f32 %v411, %v539
        %v668 = vadd.f32 %v412, %v540
        %v669 = vadd.f32 %v413, %v541
        %v670 = vadd.f32 %v414, %v542
        %v671 = vadd.f32 %v415, %v543
        %v672 = vadd.f32 %v416, %v544
        %v673 = vadd.f32 %v417, %v545
        %v674 = vadd.f32 %v418, %v546
        %v675 = vadd.f32 %v419, %v547
        %v676 = vadd.f32 %v420, %v548
        %v677 = vadd.f32 %v421, %v549
        %v678 = vadd.f32 %v422, %v550
        %v679 = vadd.f32 %v423, %v551
        %v680 = vadd.f32 %v424, %v552
        %v681 = vadd.f32 %v425, %v553
        %v682 = vadd.f32 %v426, %v554
        %v683 = vadd.f32 %v427, %v555
        %v684 = vadd.f32 %v428, %v556
        %v685 = vadd.f32 %v429, %v557
        %v686 = vadd.f32 %v430, %v558
        %v687 = vadd.f32 %v431, %v559
        %v688 = vadd.f32 %v432, %v560
        %v689 = vadd.f32 %v433, %v561
        %v690 = vadd.f32 %v434, %v562
        %v691 = vadd.f32 %v435, %v563
        %v692 = vadd.f32 %v436, %v564
        %v693 = vadd.f32 %v437, %v565
        %v694 = vadd.f32 %v438, %v566
        %v695 = vadd.f32 %v439, %v567
        %v696 = vadd.f32 %v440, %v568
        %v697 = vadd.f32 %v441, %v569
        %v698 = vadd.f32 %v442, %v570
        %v699 = vadd.f32 %v443, %v571
        %v700 = vadd.f32 %v444, %v572
        %v701 = vadd.f32 %v445, %v573
        %v702 = vadd.f32 %v446, %v574
        %v703 = vadd.f32 %v447, %v575
        %v704 = vadd.f32 %v448, %v576
        %v705 = vadd.f32 %v449, %v577
        %v706 = vadd.f32 %v450, %v578
        %v707 = vadd.f32 %v451, %v579
        %v708 = vadd.f32 %v452, %v580
        %v709 = vadd.f32 %v453, %v581
        %v710 = vadd.f32 %v454, %v582
        %v711 = vadd.f32 %v455, %v583
        %v712 = vadd.f32 %v456, %v584
        %v713 = vadd.f32 %v457, %v585
        %v714 = vadd.f32 %v458, %v586
        %v715 = vadd.f32 %v459, %v587
        %v716 = vadd.f32 %v460, %v588
        %v717 = vadd.f32 %v461, %v589
        %v718 = vadd.f32 %v462, %v590
        %v719 = vadd.f32 %v463, %v591
        %v720 = vadd.f32 %v464, %v592
        %v721 = vadd.f32 %v465, %v593
        %v722 = vadd.f32 %v466, %v594
        %v723 = vadd.f32 %v467, %v595
        %v724 = vadd.f32 %v468, %v596
        %v725 = vadd.f32 %v469, %v597
        %v726 = vadd.f32 %v470, %v598
        %v727 = vadd.f32 %v471, %v599
        %v728 = vadd.f32 %v472, %v600
        %v729 = vadd.f32 %v473, %v601
        %v730 = vadd.f32 %v474, %v602
        %v731 = vadd.f32 %v475, %v603
        %v732 = vadd.f32 %v476, %v604
        %v733 = vadd.f32 %v477, %v605
        %v734 = vadd.f32 %v478, %v606
        %v735 = vadd.f32 %v479, %v607
        %v736 = vadd.f32 %v480, %v608
        %v737 = vadd.f32 %v481, %v609
        %v738 = vadd.f32 %v482, %v610
        %v739 = vadd.f32 %v483, %v611
        %v740 = vadd.f32 %v484, %v612
        %v741 = vadd.f32 %v485, %v613
        %v742 = vadd.f32 %v486, %v614
        %v743 = vadd.f32 %v487, %v615
        %v744 = vadd.f32 %v488, %v616
        %v745 = vadd.f32 %v489, %v617
        %v746 = vadd.f32 %v490, %v618
        %v747 = vadd.f32 %v491, %v619
        %v748 = vadd.f32 %v492, %v620
        %v749 = vadd.f32 %v493, %v621
        %v750 = vadd.f32 %v494, %v622
        %v751 = vadd.f32 %v495, %v623
        %v752 = vadd.f32 %v496, %v624
        %v753 = vadd.f32 %v497, %v625
        %v754 = vadd.f32 %v498, %v626
        %v755 = vadd.f32 %v499, %v627
        %v756 = vadd.f32 %v500, %v628
        %v757 = vadd.f32 %v501, %v629
        %v758 = vadd.f32 %v502, %v630
        %v759 = vadd.f32 %v503, %v631
        %v760 = vadd.f32 %v504, %v632
        %v761 = vadd.f32 %v505, %v633
        %v762 = vadd.f32 %v506, %v634
        %v763 = vadd.f32 %v507, %v635
        %v764 = vadd.f32 %v508, %v636
        %v765 = vadd.f32 %v509, %v637
        %v766 = vadd.f32 %v510, %v638
        %v767 = vadd.f32 %v511, %v639
        %v768 = vadd.f32 %v512, %v640
        %v769 = vadd.f32 %v513, %v641
        %v770 = vadd.f32 %v514, %v642
        %v771 = vadd.f32 %v515, %v643
        %v772 = vadd.f32 %v516, %v644
        %v773 = vadd.f32 %v517, %v645
        %v774 = vadd.f32 %v518, %v646
        %v775 = vadd.f32 %v519, %v647
        %v776 = vadd.f32 %v520, %v648
        %v777 = vadd.f32 %v521, %v649
        %v778 = vadd.f32 %v522, %v650
        %v779 = vadd.f32 %v523, %v651
        %v780 = vadd.f32 %v524, %v652
        %v781 = vadd.f32 %v525, %v653
        %v782 = vadd.f32 %v526, %v654
        %v783 = vadd.f32 %v527, %v655
        %v784 = vadd.f32 %v528, %v656
        %v785 = vadd.f32 %v529, %v657
        %v786 = vadd.f32 %v530, %v658
        %v787 = vadd.f32 %v531, %v659
        %v788 = vadd.f32 %v532, %v660
        %v789 = vadd.f32 %v533, %v661
        %v790 = vadd.f32 %v534, %v662
        %v791 = vadd.f32 %v535, %v663
        %v792 = vadd.f32 %v536, %v664
        %v793 = vadd.f32 %v537, %v665
        %v794 = vld [vmem:[%s133 + $0x3] sm:$0x1]
        %v795 = vld [vmem:[%s133 + $0xb] sm:$0x1]
        %v796 = vld [vmem:[%s133 + $0x13] sm:$0x1]
        %v797 = vld [vmem:[%s133 + $0x1b] sm:$0x1]
        %v798 = vld [vmem:[%s133 + $0x23] sm:$0x1]
        %v799 = vld [vmem:[%s133 + $0x2b] sm:$0x1]
        %v800 = vld [vmem:[%s133 + $0x33] sm:$0x1]
        %v801 = vld [vmem:[%s133 + $0x3b] sm:$0x1]
        %v802 = vld [vmem:[%s133 + $0x43] sm:$0x1]
        %v803 = vld [vmem:[%s133 + $0x4b] sm:$0x1]
        %v804 = vld [vmem:[%s133 + $0x53] sm:$0x1]
        %v805 = vld [vmem:[%s133 + $0x5b] sm:$0x1]
        %v806 = vld [vmem:[%s133 + $0x63] sm:$0x1]
        %v807 = vld [vmem:[%s133 + $0x6b] sm:$0x1]
        %v808 = vld [vmem:[%s133 + $0x73] sm:$0x1]
        %v809 = vld [vmem:[%s133 + $0x7b] sm:$0x1]
        %v810 = vld [vmem:[%s133 + $0x83] sm:$0x1]
        %v811 = vld [vmem:[%s133 + $0x8b] sm:$0x1]
        %v812 = vld [vmem:[%s133 + $0x93] sm:$0x1]
        %v813 = vld [vmem:[%s133 + $0x9b] sm:$0x1]
        %v814 = vld [vmem:[%s133 + $0xa3] sm:$0x1]
        %v815 = vld [vmem:[%s133 + $0xab] sm:$0x1]
        %v816 = vld [vmem:[%s133 + $0xb3] sm:$0x1]
        %v817 = vld [vmem:[%s133 + $0xbb] sm:$0x1]
        %v818 = vld [vmem:[%s133 + $0xc3] sm:$0x1]
        %v819 = vld [vmem:[%s133 + $0xcb] sm:$0x1]
        %v820 = vld [vmem:[%s133 + $0xd3] sm:$0x1]
        %v821 = vld [vmem:[%s133 + $0xdb] sm:$0x1]
        %v822 = vld [vmem:[%s133 + $0xe3] sm:$0x1]
        %v823 = vld [vmem:[%s133 + $0xeb] sm:$0x1]
        %v824 = vld [vmem:[%s133 + $0xf3] sm:$0x1]
        %v825 = vld [vmem:[%s133 + $0xfb] sm:$0x1]
        %v826 = vld [vmem:[%s133 + $0x103] sm:$0x1]
        %v827 = vld [vmem:[%s133 + $0x10b] sm:$0x1]
        %v828 = vld [vmem:[%s133 + $0x113] sm:$0x1]
        %v829 = vld [vmem:[%s133 + $0x11b] sm:$0x1]
        %v830 = vld [vmem:[%s133 + $0x123] sm:$0x1]
        %v831 = vld [vmem:[%s133 + $0x12b] sm:$0x1]
        %v832 = vld [vmem:[%s133 + $0x133] sm:$0x1]
        %v833 = vld [vmem:[%s133 + $0x13b] sm:$0x1]
        %v834 = vld [vmem:[%s133 + $0x143] sm:$0x1]
        %v835 = vld [vmem:[%s133 + $0x14b] sm:$0x1]
        %v836 = vld [vmem:[%s133 + $0x153] sm:$0x1]
        %v837 = vld [vmem:[%s133 + $0x15b] sm:$0x1]
        %v838 = vld [vmem:[%s133 + $0x163] sm:$0x1]
        %v839 = vld [vmem:[%s133 + $0x16b] sm:$0x1]
        %v840 = vld [vmem:[%s133 + $0x173] sm:$0x1]
        %v841 = vld [vmem:[%s133 + $0x17b] sm:$0x1]
        %v842 = vld [vmem:[%s133 + $0x183] sm:$0x1]
        %v843 = vld [vmem:[%s133 + $0x18b] sm:$0x1]
        %v844 = vld [vmem:[%s133 + $0x193] sm:$0x1]
        %v845 = vld [vmem:[%s133 + $0x19b] sm:$0x1]
        %v846 = vld [vmem:[%s133 + $0x1a3] sm:$0x1]
        %v847 = vld [vmem:[%s133 + $0x1ab] sm:$0x1]
        %v848 = vld [vmem:[%s133 + $0x1b3] sm:$0x1]
        %v849 = vld [vmem:[%s133 + $0x1bb] sm:$0x1]
        %v850 = vld [vmem:[%s133 + $0x1c3] sm:$0x1]
        %v851 = vld [vmem:[%s133 + $0x1cb] sm:$0x1]
        %v852 = vld [vmem:[%s133 + $0x1d3] sm:$0x1]
        %v853 = vld [vmem:[%s133 + $0x1db] sm:$0x1]
        %v854 = vld [vmem:[%s133 + $0x1e3] sm:$0x1]
        %v855 = vld [vmem:[%s133 + $0x1eb] sm:$0x1]
        %v856 = vld [vmem:[%s133 + $0x1f3] sm:$0x1]
        %v857 = vld [vmem:[%s133 + $0x1fb] sm:$0x1]
        %v858 = vld [vmem:[%s133 + $0x203] sm:$0x1]
        %v859 = vld [vmem:[%s133 + $0x20b] sm:$0x1]
        %v860 = vld [vmem:[%s133 + $0x213] sm:$0x1]
        %v861 = vld [vmem:[%s133 + $0x21b] sm:$0x1]
        %v862 = vld [vmem:[%s133 + $0x223] sm:$0x1]
        %v863 = vld [vmem:[%s133 + $0x22b] sm:$0x1]
        %v864 = vld [vmem:[%s133 + $0x233] sm:$0x1]
        %v865 = vld [vmem:[%s133 + $0x23b] sm:$0x1]
        %v866 = vld [vmem:[%s133 + $0x243] sm:$0x1]
        %v867 = vld [vmem:[%s133 + $0x24b] sm:$0x1]
        %v868 = vld [vmem:[%s133 + $0x253] sm:$0x1]
        %v869 = vld [vmem:[%s133 + $0x25b] sm:$0x1]
        %v870 = vld [vmem:[%s133 + $0x263] sm:$0x1]
        %v871 = vld [vmem:[%s133 + $0x26b] sm:$0x1]
        %v872 = vld [vmem:[%s133 + $0x273] sm:$0x1]
        %v873 = vld [vmem:[%s133 + $0x27b] sm:$0x1]
        %v874 = vld [vmem:[%s133 + $0x283] sm:$0x1]
        %v875 = vld [vmem:[%s133 + $0x28b] sm:$0x1]
        %v876 = vld [vmem:[%s133 + $0x293] sm:$0x1]
        %v877 = vld [vmem:[%s133 + $0x29b] sm:$0x1]
        %v878 = vld [vmem:[%s133 + $0x2a3] sm:$0x1]
        %v879 = vld [vmem:[%s133 + $0x2ab] sm:$0x1]
        %v880 = vld [vmem:[%s133 + $0x2b3] sm:$0x1]
        %v881 = vld [vmem:[%s133 + $0x2bb] sm:$0x1]
        %v882 = vld [vmem:[%s133 + $0x2c3] sm:$0x1]
        %v883 = vld [vmem:[%s133 + $0x2cb] sm:$0x1]
        %v884 = vld [vmem:[%s133 + $0x2d3] sm:$0x1]
        %v885 = vld [vmem:[%s133 + $0x2db] sm:$0x1]
        %v886 = vld [vmem:[%s133 + $0x2e3] sm:$0x1]
        %v887 = vld [vmem:[%s133 + $0x2eb] sm:$0x1]
        %v888 = vld [vmem:[%s133 + $0x2f3] sm:$0x1]
        %v889 = vld [vmem:[%s133 + $0x2fb] sm:$0x1]
        %v890 = vld [vmem:[%s133 + $0x303] sm:$0x1]
        %v891 = vld [vmem:[%s133 + $0x30b] sm:$0x1]
        %v892 = vld [vmem:[%s133 + $0x313] sm:$0x1]
        %v893 = vld [vmem:[%s133 + $0x31b] sm:$0x1]
        %v894 = vld [vmem:[%s133 + $0x323] sm:$0x1]
        %v895 = vld [vmem:[%s133 + $0x32b] sm:$0x1]
        %v896 = vld [vmem:[%s133 + $0x333] sm:$0x1]
        %v897 = vld [vmem:[%s133 + $0x33b] sm:$0x1]
        %v898 = vld [vmem:[%s133 + $0x343] sm:$0x1]
        %v899 = vld [vmem:[%s133 + $0x34b] sm:$0x1]
        %v900 = vld [vmem:[%s133 + $0x353] sm:$0x1]
        %v901 = vld [vmem:[%s133 + $0x35b] sm:$0x1]
        %v902 = vld [vmem:[%s133 + $0x363] sm:$0x1]
        %v903 = vld [vmem:[%s133 + $0x36b] sm:$0x1]
        %v904 = vld [vmem:[%s133 + $0x373] sm:$0x1]
        %v905 = vld [vmem:[%s133 + $0x37b] sm:$0x1]
        %v906 = vld [vmem:[%s133 + $0x383] sm:$0x1]
        %v907 = vld [vmem:[%s133 + $0x38b] sm:$0x1]
        %v908 = vld [vmem:[%s133 + $0x393] sm:$0x1]
        %v909 = vld [vmem:[%s133 + $0x39b] sm:$0x1]
        %v910 = vld [vmem:[%s133 + $0x3a3] sm:$0x1]
        %v911 = vld [vmem:[%s133 + $0x3ab] sm:$0x1]
        %v912 = vld [vmem:[%s133 + $0x3b3] sm:$0x1]
        %v913 = vld [vmem:[%s133 + $0x3bb] sm:$0x1]
        %v914 = vld [vmem:[%s133 + $0x3c3] sm:$0x1]
        %v915 = vld [vmem:[%s133 + $0x3cb] sm:$0x1]
        %v916 = vld [vmem:[%s133 + $0x3d3] sm:$0x1]
        %v917 = vld [vmem:[%s133 + $0x3db] sm:$0x1]
        %v918 = vld [vmem:[%s133 + $0x3e3] sm:$0x1]
        %v919 = vld [vmem:[%s133 + $0x3eb] sm:$0x1]
        %v920 = vld [vmem:[%s133 + $0x3f3] sm:$0x1]
        %v921 = vld [vmem:[%s133 + $0x3fb] sm:$0x1]
        %v922 = vadd.f32 %v666, %v794
        %v923 = vadd.f32 %v667, %v795
        %v924 = vadd.f32 %v668, %v796
        %v925 = vadd.f32 %v669, %v797
        %v926 = vadd.f32 %v670, %v798
        %v927 = vadd.f32 %v671, %v799
        %v928 = vadd.f32 %v672, %v800
        %v929 = vadd.f32 %v673, %v801
        %v930 = vadd.f32 %v674, %v802
        %v931 = vadd.f32 %v675, %v803
        %v932 = vadd.f32 %v676, %v804
        %v933 = vadd.f32 %v677, %v805
        %v934 = vadd.f32 %v678, %v806
        %v935 = vadd.f32 %v679, %v807
        %v936 = vadd.f32 %v680, %v808
        %v937 = vadd.f32 %v681, %v809
        %v938 = vadd.f32 %v682, %v810
        %v939 = vadd.f32 %v683, %v811
        %v940 = vadd.f32 %v684, %v812
        %v941 = vadd.f32 %v685, %v813
        %v942 = vadd.f32 %v686, %v814
        %v943 = vadd.f32 %v687, %v815
        %v944 = vadd.f32 %v688, %v816
        %v945 = vadd.f32 %v689, %v817
        %v946 = vadd.f32 %v690, %v818
        %v947 = vadd.f32 %v691, %v819
        %v948 = vadd.f32 %v692, %v820
        %v949 = vadd.f32 %v693, %v821
        %v950 = vadd.f32 %v694, %v822
        %v951 = vadd.f32 %v695, %v823
        %v952 = vadd.f32 %v696, %v824
        %v953 = vadd.f32 %v697, %v825
        %v954 = vadd.f32 %v698, %v826
        %v955 = vadd.f32 %v699, %v827
        %v956 = vadd.f32 %v700, %v828
        %v957 = vadd.f32 %v701, %v829
        %v958 = vadd.f32 %v702, %v830
        %v959 = vadd.f32 %v703, %v831
        %v960 = vadd.f32 %v704, %v832
        %v961 = vadd.f32 %v705, %v833
        %v962 = vadd.f32 %v706, %v834
        %v963 = vadd.f32 %v707, %v835
        %v964 = vadd.f32 %v708, %v836
        %v965 = vadd.f32 %v709, %v837
        %v966 = vadd.f32 %v710, %v838
        %v967 = vadd.f32 %v711, %v839
        %v968 = vadd.f32 %v712, %v840
        %v969 = vadd.f32 %v713, %v841
        %v970 = vadd.f32 %v714, %v842
        %v971 = vadd.f32 %v715, %v843
        %v972 = vadd.f32 %v716, %v844
        %v973 = vadd.f32 %v717, %v845
        %v974 = vadd.f32 %v718, %v846
        %v975 = vadd.f32 %v719, %v847
        %v976 = vadd.f32 %v720, %v848
        %v977 = vadd.f32 %v721, %v849
        %v978 = vadd.f32 %v722, %v850
        %v979 = vadd.f32 %v723, %v851
        %v980 = vadd.f32 %v724, %v852
        %v981 = vadd.f32 %v725, %v853
        %v982 = vadd.f32 %v726, %v854
        %v983 = vadd.f32 %v727, %v855
        %v984 = vadd.f32 %v728, %v856
        %v985 = vadd.f32 %v729, %v857
        %v986 = vadd.f32 %v730, %v858
        %v987 = vadd.f32 %v731, %v859
        %v988 = vadd.f32 %v732, %v860
        %v989 = vadd.f32 %v733, %v861
        %v990 = vadd.f32 %v734, %v862
        %v991 = vadd.f32 %v735, %v863
        %v992 = vadd.f32 %v736, %v864
        %v993 = vadd.f32 %v737, %v865
        %v994 = vadd.f32 %v738, %v866
        %v995 = vadd.f32 %v739, %v867
        %v996 = vadd.f32 %v740, %v868
        %v997 = vadd.f32 %v741, %v869
        %v998 = vadd.f32 %v742, %v870
        %v999 = vadd.f32 %v743, %v871
        %v1000 = vadd.f32 %v744, %v872
        %v1001 = vadd.f32 %v745, %v873
        %v1002 = vadd.f32 %v746, %v874
        %v1003 = vadd.f32 %v747, %v875
        %v1004 = vadd.f32 %v748, %v876
        %v1005 = vadd.f32 %v749, %v877
        %v1006 = vadd.f32 %v750, %v878
        %v1007 = vadd.f32 %v751, %v879
        %v1008 = vadd.f32 %v752, %v880
        %v1009 = vadd.f32 %v753, %v881
        %v1010 = vadd.f32 %v754, %v882
        %v1011 = vadd.f32 %v755, %v883
        %v1012 = vadd.f32 %v756, %v884
        %v1013 = vadd.f32 %v757, %v885
        %v1014 = vadd.f32 %v758, %v886
        %v1015 = vadd.f32 %v759, %v887
        %v1016 = vadd.f32 %v760, %v888
        %v1017 = vadd.f32 %v761, %v889
        %v1018 = vadd.f32 %v762, %v890
        %v1019 = vadd.f32 %v763, %v891
        %v1020 = vadd.f32 %v764, %v892
        %v1021 = vadd.f32 %v765, %v893
        %v1022 = vadd.f32 %v766, %v894
        %v1023 = vadd.f32 %v767, %v895
        %v1024 = vadd.f32 %v768, %v896
        %v1025 = vadd.f32 %v769, %v897
        %v1026 = vadd.f32 %v770, %v898
        %v1027 = vadd.f32 %v771, %v899
        %v1028 = vadd.f32 %v772, %v900
        %v1029 = vadd.f32 %v773, %v901
        %v1030 = vadd.f32 %v774, %v902
        %v1031 = vadd.f32 %v775, %v903
        %v1032 = vadd.f32 %v776, %v904
        %v1033 = vadd.f32 %v777, %v905
        %v1034 = vadd.f32 %v778, %v906
        %v1035 = vadd.f32 %v779, %v907
        %v1036 = vadd.f32 %v780, %v908
        %v1037 = vadd.f32 %v781, %v909
        %v1038 = vadd.f32 %v782, %v910
        %v1039 = vadd.f32 %v783, %v911
        %v1040 = vadd.f32 %v784, %v912
        %v1041 = vadd.f32 %v785, %v913
        %v1042 = vadd.f32 %v786, %v914
        %v1043 = vadd.f32 %v787, %v915
        %v1044 = vadd.f32 %v788, %v916
        %v1045 = vadd.f32 %v789, %v917
        %v1046 = vadd.f32 %v790, %v918
        %v1047 = vadd.f32 %v791, %v919
        %v1048 = vadd.f32 %v792, %v920
        %v1049 = vadd.f32 %v793, %v921
        %v1050 = vld [vmem:[%s133 + $0x4] sm:$0x1]
        %v1051 = vld [vmem:[%s133 + $0xc] sm:$0x1]
        %v1052 = vld [vmem:[%s133 + $0x14] sm:$0x1]
        %v1053 = vld [vmem:[%s133 + $0x1c] sm:$0x1]
        %v1054 = vld [vmem:[%s133 + $0x24] sm:$0x1]
        %v1055 = vld [vmem:[%s133 + $0x2c] sm:$0x1]
        %v1056 = vld [vmem:[%s133 + $0x34] sm:$0x1]
        %v1057 = vld [vmem:[%s133 + $0x3c] sm:$0x1]
        %v1058 = vld [vmem:[%s133 + $0x44] sm:$0x1]
        %v1059 = vld [vmem:[%s133 + $0x4c] sm:$0x1]
        %v1060 = vld [vmem:[%s133 + $0x54] sm:$0x1]
        %v1061 = vld [vmem:[%s133 + $0x5c] sm:$0x1]
        %v1062 = vld [vmem:[%s133 + $0x64] sm:$0x1]
        %v1063 = vld [vmem:[%s133 + $0x6c] sm:$0x1]
        %v1064 = vld [vmem:[%s133 + $0x74] sm:$0x1]
        %v1065 = vld [vmem:[%s133 + $0x7c] sm:$0x1]
        %v1066 = vld [vmem:[%s133 + $0x84] sm:$0x1]
        %v1067 = vld [vmem:[%s133 + $0x8c] sm:$0x1]
        %v1068 = vld [vmem:[%s133 + $0x94] sm:$0x1]
        %v1069 = vld [vmem:[%s133 + $0x9c] sm:$0x1]
        %v1070 = vld [vmem:[%s133 + $0xa4] sm:$0x1]
        %v1071 = vld [vmem:[%s133 + $0xac] sm:$0x1]
        %v1072 = vld [vmem:[%s133 + $0xb4] sm:$0x1]
        %v1073 = vld [vmem:[%s133 + $0xbc] sm:$0x1]
        %v1074 = vld [vmem:[%s133 + $0xc4] sm:$0x1]
        %v1075 = vld [vmem:[%s133 + $0xcc] sm:$0x1]
        %v1076 = vld [vmem:[%s133 + $0xd4] sm:$0x1]
        %v1077 = vld [vmem:[%s133 + $0xdc] sm:$0x1]
        %v1078 = vld [vmem:[%s133 + $0xe4] sm:$0x1]
        %v1079 = vld [vmem:[%s133 + $0xec] sm:$0x1]
        %v1080 = vld [vmem:[%s133 + $0xf4] sm:$0x1]
        %v1081 = vld [vmem:[%s133 + $0xfc] sm:$0x1]
        %v1082 = vld [vmem:[%s133 + $0x104] sm:$0x1]
        %v1083 = vld [vmem:[%s133 + $0x10c] sm:$0x1]
        %v1084 = vld [vmem:[%s133 + $0x114] sm:$0x1]
        %v1085 = vld [vmem:[%s133 + $0x11c] sm:$0x1]
        %v1086 = vld [vmem:[%s133 + $0x124] sm:$0x1]
        %v1087 = vld [vmem:[%s133 + $0x12c] sm:$0x1]
        %v1088 = vld [vmem:[%s133 + $0x134] sm:$0x1]
        %v1089 = vld [vmem:[%s133 + $0x13c] sm:$0x1]
        %v1090 = vld [vmem:[%s133 + $0x144] sm:$0x1]
        %v1091 = vld [vmem:[%s133 + $0x14c] sm:$0x1]
        %v1092 = vld [vmem:[%s133 + $0x154] sm:$0x1]
        %v1093 = vld [vmem:[%s133 + $0x15c] sm:$0x1]
        %v1094 = vld [vmem:[%s133 + $0x164] sm:$0x1]
        %v1095 = vld [vmem:[%s133 + $0x16c] sm:$0x1]
        %v1096 = vld [vmem:[%s133 + $0x174] sm:$0x1]
        %v1097 = vld [vmem:[%s133 + $0x17c] sm:$0x1]
        %v1098 = vld [vmem:[%s133 + $0x184] sm:$0x1]
        %v1099 = vld [vmem:[%s133 + $0x18c] sm:$0x1]
        %v1100 = vld [vmem:[%s133 + $0x194] sm:$0x1]
        %v1101 = vld [vmem:[%s133 + $0x19c] sm:$0x1]
        %v1102 = vld [vmem:[%s133 + $0x1a4] sm:$0x1]
        %v1103 = vld [vmem:[%s133 + $0x1ac] sm:$0x1]
        %v1104 = vld [vmem:[%s133 + $0x1b4] sm:$0x1]
        %v1105 = vld [vmem:[%s133 + $0x1bc] sm:$0x1]
        %v1106 = vld [vmem:[%s133 + $0x1c4] sm:$0x1]
        %v1107 = vld [vmem:[%s133 + $0x1cc] sm:$0x1]
        %v1108 = vld [vmem:[%s133 + $0x1d4] sm:$0x1]
        %v1109 = vld [vmem:[%s133 + $0x1dc] sm:$0x1]
        %v1110 = vld [vmem:[%s133 + $0x1e4] sm:$0x1]
        %v1111 = vld [vmem:[%s133 + $0x1ec] sm:$0x1]
        %v1112 = vld [vmem:[%s133 + $0x1f4] sm:$0x1]
        %v1113 = vld [vmem:[%s133 + $0x1fc] sm:$0x1]
        %v1114 = vld [vmem:[%s133 + $0x204] sm:$0x1]
        %v1115 = vld [vmem:[%s133 + $0x20c] sm:$0x1]
        %v1116 = vld [vmem:[%s133 + $0x214] sm:$0x1]
        %v1117 = vld [vmem:[%s133 + $0x21c] sm:$0x1]
        %v1118 = vld [vmem:[%s133 + $0x224] sm:$0x1]
        %v1119 = vld [vmem:[%s133 + $0x22c] sm:$0x1]
        %v1120 = vld [vmem:[%s133 + $0x234] sm:$0x1]
        %v1121 = vld [vmem:[%s133 + $0x23c] sm:$0x1]
        %v1122 = vld [vmem:[%s133 + $0x244] sm:$0x1]
        %v1123 = vld [vmem:[%s133 + $0x24c] sm:$0x1]
        %v1124 = vld [vmem:[%s133 + $0x254] sm:$0x1]
        %v1125 = vld [vmem:[%s133 + $0x25c] sm:$0x1]
        %v1126 = vld [vmem:[%s133 + $0x264] sm:$0x1]
        %v1127 = vld [vmem:[%s133 + $0x26c] sm:$0x1]
        %v1128 = vld [vmem:[%s133 + $0x274] sm:$0x1]
        %v1129 = vld [vmem:[%s133 + $0x27c] sm:$0x1]
        %v1130 = vld [vmem:[%s133 + $0x284] sm:$0x1]
        %v1131 = vld [vmem:[%s133 + $0x28c] sm:$0x1]
        %v1132 = vld [vmem:[%s133 + $0x294] sm:$0x1]
        %v1133 = vld [vmem:[%s133 + $0x29c] sm:$0x1]
        %v1134 = vld [vmem:[%s133 + $0x2a4] sm:$0x1]
        %v1135 = vld [vmem:[%s133 + $0x2ac] sm:$0x1]
        %v1136 = vld [vmem:[%s133 + $0x2b4] sm:$0x1]
        %v1137 = vld [vmem:[%s133 + $0x2bc] sm:$0x1]
        %v1138 = vld [vmem:[%s133 + $0x2c4] sm:$0x1]
        %v1139 = vld [vmem:[%s133 + $0x2cc] sm:$0x1]
        %v1140 = vld [vmem:[%s133 + $0x2d4] sm:$0x1]
        %v1141 = vld [vmem:[%s133 + $0x2dc] sm:$0x1]
        %v1142 = vld [vmem:[%s133 + $0x2e4] sm:$0x1]
        %v1143 = vld [vmem:[%s133 + $0x2ec] sm:$0x1]
        %v1144 = vld [vmem:[%s133 + $0x2f4] sm:$0x1]
        %v1145 = vld [vmem:[%s133 + $0x2fc] sm:$0x1]
        %v1146 = vld [vmem:[%s133 + $0x304] sm:$0x1]
        %v1147 = vld [vmem:[%s133 + $0x30c] sm:$0x1]
        %v1148 = vld [vmem:[%s133 + $0x314] sm:$0x1]
        %v1149 = vld [vmem:[%s133 + $0x31c] sm:$0x1]
        %v1150 = vld [vmem:[%s133 + $0x324] sm:$0x1]
        %v1151 = vld [vmem:[%s133 + $0x32c] sm:$0x1]
        %v1152 = vld [vmem:[%s133 + $0x334] sm:$0x1]
        %v1153 = vld [vmem:[%s133 + $0x33c] sm:$0x1]
        %v1154 = vld [vmem:[%s133 + $0x344] sm:$0x1]
        %v1155 = vld [vmem:[%s133 + $0x34c] sm:$0x1]
        %v1156 = vld [vmem:[%s133 + $0x354] sm:$0x1]
        %v1157 = vld [vmem:[%s133 + $0x35c] sm:$0x1]
        %v1158 = vld [vmem:[%s133 + $0x364] sm:$0x1]
        %v1159 = vld [vmem:[%s133 + $0x36c] sm:$0x1]
        %v1160 = vld [vmem:[%s133 + $0x374] sm:$0x1]
        %v1161 = vld [vmem:[%s133 + $0x37c] sm:$0x1]
        %v1162 = vld [vmem:[%s133 + $0x384] sm:$0x1]
        %v1163 = vld [vmem:[%s133 + $0x38c] sm:$0x1]
        %v1164 = vld [vmem:[%s133 + $0x394] sm:$0x1]
        %v1165 = vld [vmem:[%s133 + $0x39c] sm:$0x1]
        %v1166 = vld [vmem:[%s133 + $0x3a4] sm:$0x1]
        %v1167 = vld [vmem:[%s133 + $0x3ac] sm:$0x1]
        %v1168 = vld [vmem:[%s133 + $0x3b4] sm:$0x1]
        %v1169 = vld [vmem:[%s133 + $0x3bc] sm:$0x1]
        %v1170 = vld [vmem:[%s133 + $0x3c4] sm:$0x1]
        %v1171 = vld [vmem:[%s133 + $0x3cc] sm:$0x1]
        %v1172 = vld [vmem:[%s133 + $0x3d4] sm:$0x1]
        %v1173 = vld [vmem:[%s133 + $0x3dc] sm:$0x1]
        %v1174 = vld [vmem:[%s133 + $0x3e4] sm:$0x1]
        %v1175 = vld [vmem:[%s133 + $0x3ec] sm:$0x1]
        %v1176 = vld [vmem:[%s133 + $0x3f4] sm:$0x1]
        %v1177 = vld [vmem:[%s133 + $0x3fc] sm:$0x1]
        %v1178 = vadd.f32 %v922, %v1050
        %v1179 = vadd.f32 %v923, %v1051
        %v1180 = vadd.f32 %v924, %v1052
        %v1181 = vadd.f32 %v925, %v1053
        %v1182 = vadd.f32 %v926, %v1054
        %v1183 = vadd.f32 %v927, %v1055
        %v1184 = vadd.f32 %v928, %v1056
        %v1185 = vadd.f32 %v929, %v1057
        %v1186 = vadd.f32 %v930, %v1058
        %v1187 = vadd.f32 %v931, %v1059
        %v1188 = vadd.f32 %v932, %v1060
        %v1189 = vadd.f32 %v933, %v1061
        %v1190 = vadd.f32 %v934, %v1062
        %v1191 = vadd.f32 %v935, %v1063
        %v1192 = vadd.f32 %v936, %v1064
        %v1193 = vadd.f32 %v937, %v1065
        %v1194 = vadd.f32 %v938, %v1066
        %v1195 = vadd.f32 %v939, %v1067
        %v1196 = vadd.f32 %v940, %v1068
        %v1197 = vadd.f32 %v941, %v1069
        %v1198 = vadd.f32 %v942, %v1070
        %v1199 = vadd.f32 %v943, %v1071
        %v1200 = vadd.f32 %v944, %v1072
        %v1201 = vadd.f32 %v945, %v1073
        %v1202 = vadd.f32 %v946, %v1074
        %v1203 = vadd.f32 %v947, %v1075
        %v1204 = vadd.f32 %v948, %v1076
        %v1205 = vadd.f32 %v949, %v1077
        %v1206 = vadd.f32 %v950, %v1078
        %v1207 = vadd.f32 %v951, %v1079
        %v1208 = vadd.f32 %v952, %v1080
        %v1209 = vadd.f32 %v953, %v1081
        %v1210 = vadd.f32 %v954, %v1082
        %v1211 = vadd.f32 %v955, %v1083
        %v1212 = vadd.f32 %v956, %v1084
        %v1213 = vadd.f32 %v957, %v1085
        %v1214 = vadd.f32 %v958, %v1086
        %v1215 = vadd.f32 %v959, %v1087
        %v1216 = vadd.f32 %v960, %v1088
        %v1217 = vadd.f32 %v961, %v1089
        %v1218 = vadd.f32 %v962, %v1090
        %v1219 = vadd.f32 %v963, %v1091
        %v1220 = vadd.f32 %v964, %v1092
        %v1221 = vadd.f32 %v965, %v1093
        %v1222 = vadd.f32 %v966, %v1094
        %v1223 = vadd.f32 %v967, %v1095
        %v1224 = vadd.f32 %v968, %v1096
        %v1225 = vadd.f32 %v969, %v1097
        %v1226 = vadd.f32 %v970, %v1098
        %v1227 = vadd.f32 %v971, %v1099
        %v1228 = vadd.f32 %v972, %v1100
        %v1229 = vadd.f32 %v973, %v1101
        %v1230 = vadd.f32 %v974, %v1102
        %v1231 = vadd.f32 %v975, %v1103
        %v1232 = vadd.f32 %v976, %v1104
        %v1233 = vadd.f32 %v977, %v1105
        %v1234 = vadd.f32 %v978, %v1106
        %v1235 = vadd.f32 %v979, %v1107
        %v1236 = vadd.f32 %v980, %v1108
        %v1237 = vadd.f32 %v981, %v1109
        %v1238 = vadd.f32 %v982, %v1110
        %v1239 = vadd.f32 %v983, %v1111
        %v1240 = vadd.f32 %v984, %v1112
        %v1241 = vadd.f32 %v985, %v1113
        %v1242 = vadd.f32 %v986, %v1114
        %v1243 = vadd.f32 %v987, %v1115
        %v1244 = vadd.f32 %v988, %v1116
        %v1245 = vadd.f32 %v989, %v1117
        %v1246 = vadd.f32 %v990, %v1118
        %v1247 = vadd.f32 %v991, %v1119
        %v1248 = vadd.f32 %v992, %v1120
        %v1249 = vadd.f32 %v993, %v1121
        %v1250 = vadd.f32 %v994, %v1122
        %v1251 = vadd.f32 %v995, %v1123
        %v1252 = vadd.f32 %v996, %v1124
        %v1253 = vadd.f32 %v997, %v1125
        %v1254 = vadd.f32 %v998, %v1126
        %v1255 = vadd.f32 %v999, %v1127
        %v1256 = vadd.f32 %v1000, %v1128
        %v1257 = vadd.f32 %v1001, %v1129
        %v1258 = vadd.f32 %v1002, %v1130
        %v1259 = vadd.f32 %v1003, %v1131
        %v1260 = vadd.f32 %v1004, %v1132
        %v1261 = vadd.f32 %v1005, %v1133
        %v1262 = vadd.f32 %v1006, %v1134
        %v1263 = vadd.f32 %v1007, %v1135
        %v1264 = vadd.f32 %v1008, %v1136
        %v1265 = vadd.f32 %v1009, %v1137
        %v1266 = vadd.f32 %v1010, %v1138
        %v1267 = vadd.f32 %v1011, %v1139
        %v1268 = vadd.f32 %v1012, %v1140
        %v1269 = vadd.f32 %v1013, %v1141
        %v1270 = vadd.f32 %v1014, %v1142
        %v1271 = vadd.f32 %v1015, %v1143
        %v1272 = vadd.f32 %v1016, %v1144
        %v1273 = vadd.f32 %v1017, %v1145
        %v1274 = vadd.f32 %v1018, %v1146
        %v1275 = vadd.f32 %v1019, %v1147
        %v1276 = vadd.f32 %v1020, %v1148
        %v1277 = vadd.f32 %v1021, %v1149
        %v1278 = vadd.f32 %v1022, %v1150
        %v1279 = vadd.f32 %v1023, %v1151
        %v1280 = vadd.f32 %v1024, %v1152
        %v1281 = vadd.f32 %v1025, %v1153
        %v1282 = vadd.f32 %v1026, %v1154
        %v1283 = vadd.f32 %v1027, %v1155
        %v1284 = vadd.f32 %v1028, %v1156
        %v1285 = vadd.f32 %v1029, %v1157
        %v1286 = vadd.f32 %v1030, %v1158
        %v1287 = vadd.f32 %v1031, %v1159
        %v1288 = vadd.f32 %v1032, %v1160
        %v1289 = vadd.f32 %v1033, %v1161
        %v1290 = vadd.f32 %v1034, %v1162
        %v1291 = vadd.f32 %v1035, %v1163
        %v1292 = vadd.f32 %v1036, %v1164
        %v1293 = vadd.f32 %v1037, %v1165
        %v1294 = vadd.f32 %v1038, %v1166
        %v1295 = vadd.f32 %v1039, %v1167
        %v1296 = vadd.f32 %v1040, %v1168
        %v1297 = vadd.f32 %v1041, %v1169
        %v1298 = vadd.f32 %v1042, %v1170
        %v1299 = vadd.f32 %v1043, %v1171
        %v1300 = vadd.f32 %v1044, %v1172
        %v1301 = vadd.f32 %v1045, %v1173
        %v1302 = vadd.f32 %v1046, %v1174
        %v1303 = vadd.f32 %v1047, %v1175
        %v1304 = vadd.f32 %v1048, %v1176
        %v1305 = vadd.f32 %v1049, %v1177
        %v1306 = vld [vmem:[%s133 + $0x5] sm:$0x1]
        %v1307 = vld [vmem:[%s133 + $0xd] sm:$0x1]
        %v1308 = vld [vmem:[%s133 + $0x15] sm:$0x1]
        %v1309 = vld [vmem:[%s133 + $0x1d] sm:$0x1]
        %v1310 = vld [vmem:[%s133 + $0x25] sm:$0x1]
        %v1311 = vld [vmem:[%s133 + $0x2d] sm:$0x1]
        %v1312 = vld [vmem:[%s133 + $0x35] sm:$0x1]
        %v1313 = vld [vmem:[%s133 + $0x3d] sm:$0x1]
        %v1314 = vld [vmem:[%s133 + $0x45] sm:$0x1]
        %v1315 = vld [vmem:[%s133 + $0x4d] sm:$0x1]
        %v1316 = vld [vmem:[%s133 + $0x55] sm:$0x1]
        %v1317 = vld [vmem:[%s133 + $0x5d] sm:$0x1]
        %v1318 = vld [vmem:[%s133 + $0x65] sm:$0x1]
        %v1319 = vld [vmem:[%s133 + $0x6d] sm:$0x1]
        %v1320 = vld [vmem:[%s133 + $0x75] sm:$0x1]
        %v1321 = vld [vmem:[%s133 + $0x7d] sm:$0x1]
        %v1322 = vld [vmem:[%s133 + $0x85] sm:$0x1]
        %v1323 = vld [vmem:[%s133 + $0x8d] sm:$0x1]
        %v1324 = vld [vmem:[%s133 + $0x95] sm:$0x1]
        %v1325 = vld [vmem:[%s133 + $0x9d] sm:$0x1]
        %v1326 = vld [vmem:[%s133 + $0xa5] sm:$0x1]
        %v1327 = vld [vmem:[%s133 + $0xad] sm:$0x1]
        %v1328 = vld [vmem:[%s133 + $0xb5] sm:$0x1]
        %v1329 = vld [vmem:[%s133 + $0xbd] sm:$0x1]
        %v1330 = vld [vmem:[%s133 + $0xc5] sm:$0x1]
        %v1331 = vld [vmem:[%s133 + $0xcd] sm:$0x1]
        %v1332 = vld [vmem:[%s133 + $0xd5] sm:$0x1]
        %v1333 = vld [vmem:[%s133 + $0xdd] sm:$0x1]
        %v1334 = vld [vmem:[%s133 + $0xe5] sm:$0x1]
        %v1335 = vld [vmem:[%s133 + $0xed] sm:$0x1]
        %v1336 = vld [vmem:[%s133 + $0xf5] sm:$0x1]
        %v1337 = vld [vmem:[%s133 + $0xfd] sm:$0x1]
        %v1338 = vld [vmem:[%s133 + $0x105] sm:$0x1]
        %v1339 = vld [vmem:[%s133 + $0x10d] sm:$0x1]
        %v1340 = vld [vmem:[%s133 + $0x115] sm:$0x1]
        %v1341 = vld [vmem:[%s133 + $0x11d] sm:$0x1]
        %v1342 = vld [vmem:[%s133 + $0x125] sm:$0x1]
        %v1343 = vld [vmem:[%s133 + $0x12d] sm:$0x1]
        %v1344 = vld [vmem:[%s133 + $0x135] sm:$0x1]
        %v1345 = vld [vmem:[%s133 + $0x13d] sm:$0x1]
        %v1346 = vld [vmem:[%s133 + $0x145] sm:$0x1]
        %v1347 = vld [vmem:[%s133 + $0x14d] sm:$0x1]
        %v1348 = vld [vmem:[%s133 + $0x155] sm:$0x1]
        %v1349 = vld [vmem:[%s133 + $0x15d] sm:$0x1]
        %v1350 = vld [vmem:[%s133 + $0x165] sm:$0x1]
        %v1351 = vld [vmem:[%s133 + $0x16d] sm:$0x1]
        %v1352 = vld [vmem:[%s133 + $0x175] sm:$0x1]
        %v1353 = vld [vmem:[%s133 + $0x17d] sm:$0x1]
        %v1354 = vld [vmem:[%s133 + $0x185] sm:$0x1]
        %v1355 = vld [vmem:[%s133 + $0x18d] sm:$0x1]
        %v1356 = vld [vmem:[%s133 + $0x195] sm:$0x1]
        %v1357 = vld [vmem:[%s133 + $0x19d] sm:$0x1]
        %v1358 = vld [vmem:[%s133 + $0x1a5] sm:$0x1]
        %v1359 = vld [vmem:[%s133 + $0x1ad] sm:$0x1]
        %v1360 = vld [vmem:[%s133 + $0x1b5] sm:$0x1]
        %v1361 = vld [vmem:[%s133 + $0x1bd] sm:$0x1]
        %v1362 = vld [vmem:[%s133 + $0x1c5] sm:$0x1]
        %v1363 = vld [vmem:[%s133 + $0x1cd] sm:$0x1]
        %v1364 = vld [vmem:[%s133 + $0x1d5] sm:$0x1]
        %v1365 = vld [vmem:[%s133 + $0x1dd] sm:$0x1]
        %v1366 = vld [vmem:[%s133 + $0x1e5] sm:$0x1]
        %v1367 = vld [vmem:[%s133 + $0x1ed] sm:$0x1]
        %v1368 = vld [vmem:[%s133 + $0x1f5] sm:$0x1]
        %v1369 = vld [vmem:[%s133 + $0x1fd] sm:$0x1]
        %v1370 = vld [vmem:[%s133 + $0x205] sm:$0x1]
        %v1371 = vld [vmem:[%s133 + $0x20d] sm:$0x1]
        %v1372 = vld [vmem:[%s133 + $0x215] sm:$0x1]
        %v1373 = vld [vmem:[%s133 + $0x21d] sm:$0x1]
        %v1374 = vld [vmem:[%s133 + $0x225] sm:$0x1]
        %v1375 = vld [vmem:[%s133 + $0x22d] sm:$0x1]
        %v1376 = vld [vmem:[%s133 + $0x235] sm:$0x1]
        %v1377 = vld [vmem:[%s133 + $0x23d] sm:$0x1]
        %v1378 = vld [vmem:[%s133 + $0x245] sm:$0x1]
        %v1379 = vld [vmem:[%s133 + $0x24d] sm:$0x1]
        %v1380 = vld [vmem:[%s133 + $0x255] sm:$0x1]
        %v1381 = vld [vmem:[%s133 + $0x25d] sm:$0x1]
        %v1382 = vld [vmem:[%s133 + $0x265] sm:$0x1]
        %v1383 = vld [vmem:[%s133 + $0x26d] sm:$0x1]
        %v1384 = vld [vmem:[%s133 + $0x275] sm:$0x1]
        %v1385 = vld [vmem:[%s133 + $0x27d] sm:$0x1]
        %v1386 = vld [vmem:[%s133 + $0x285] sm:$0x1]
        %v1387 = vld [vmem:[%s133 + $0x28d] sm:$0x1]
        %v1388 = vld [vmem:[%s133 + $0x295] sm:$0x1]
        %v1389 = vld [vmem:[%s133 + $0x29d] sm:$0x1]
        %v1390 = vld [vmem:[%s133 + $0x2a5] sm:$0x1]
        %v1391 = vld [vmem:[%s133 + $0x2ad] sm:$0x1]
        %v1392 = vld [vmem:[%s133 + $0x2b5] sm:$0x1]
        %v1393 = vld [vmem:[%s133 + $0x2bd] sm:$0x1]
        %v1394 = vld [vmem:[%s133 + $0x2c5] sm:$0x1]
        %v1395 = vld [vmem:[%s133 + $0x2cd] sm:$0x1]
        %v1396 = vld [vmem:[%s133 + $0x2d5] sm:$0x1]
        %v1397 = vld [vmem:[%s133 + $0x2dd] sm:$0x1]
        %v1398 = vld [vmem:[%s133 + $0x2e5] sm:$0x1]
        %v1399 = vld [vmem:[%s133 + $0x2ed] sm:$0x1]
        %v1400 = vld [vmem:[%s133 + $0x2f5] sm:$0x1]
        %v1401 = vld [vmem:[%s133 + $0x2fd] sm:$0x1]
        %v1402 = vld [vmem:[%s133 + $0x305] sm:$0x1]
        %v1403 = vld [vmem:[%s133 + $0x30d] sm:$0x1]
        %v1404 = vld [vmem:[%s133 + $0x315] sm:$0x1]
        %v1405 = vld [vmem:[%s133 + $0x31d] sm:$0x1]
        %v1406 = vld [vmem:[%s133 + $0x325] sm:$0x1]
        %v1407 = vld [vmem:[%s133 + $0x32d] sm:$0x1]
        %v1408 = vld [vmem:[%s133 + $0x335] sm:$0x1]
        %v1409 = vld [vmem:[%s133 + $0x33d] sm:$0x1]
        %v1410 = vld [vmem:[%s133 + $0x345] sm:$0x1]
        %v1411 = vld [vmem:[%s133 + $0x34d] sm:$0x1]
        %v1412 = vld [vmem:[%s133 + $0x355] sm:$0x1]
        %v1413 = vld [vmem:[%s133 + $0x35d] sm:$0x1]
        %v1414 = vld [vmem:[%s133 + $0x365] sm:$0x1]
        %v1415 = vld [vmem:[%s133 + $0x36d] sm:$0x1]
        %v1416 = vld [vmem:[%s133 + $0x375] sm:$0x1]
        %v1417 = vld [vmem:[%s133 + $0x37d] sm:$0x1]
        %v1418 = vld [vmem:[%s133 + $0x385] sm:$0x1]
        %v1419 = vld [vmem:[%s133 + $0x38d] sm:$0x1]
        %v1420 = vld [vmem:[%s133 + $0x395] sm:$0x1]
        %v1421 = vld [vmem:[%s133 + $0x39d] sm:$0x1]
        %v1422 = vld [vmem:[%s133 + $0x3a5] sm:$0x1]
        %v1423 = vld [vmem:[%s133 + $0x3ad] sm:$0x1]
        %v1424 = vld [vmem:[%s133 + $0x3b5] sm:$0x1]
        %v1425 = vld [vmem:[%s133 + $0x3bd] sm:$0x1]
        %v1426 = vld [vmem:[%s133 + $0x3c5] sm:$0x1]
        %v1427 = vld [vmem:[%s133 + $0x3cd] sm:$0x1]
        %v1428 = vld [vmem:[%s133 + $0x3d5] sm:$0x1]
        %v1429 = vld [vmem:[%s133 + $0x3dd] sm:$0x1]
        %v1430 = vld [vmem:[%s133 + $0x3e5] sm:$0x1]
        %v1431 = vld [vmem:[%s133 + $0x3ed] sm:$0x1]
        %v1432 = vld [vmem:[%s133 + $0x3f5] sm:$0x1]
        %v1433 = vld [vmem:[%s133 + $0x3fd] sm:$0x1]
        %v1434 = vadd.f32 %v1178, %v1306
        %v1435 = vadd.f32 %v1179, %v1307
        %v1436 = vadd.f32 %v1180, %v1308
        %v1437 = vadd.f32 %v1181, %v1309
        %v1438 = vadd.f32 %v1182, %v1310
        %v1439 = vadd.f32 %v1183, %v1311
        %v1440 = vadd.f32 %v1184, %v1312
        %v1441 = vadd.f32 %v1185, %v1313
        %v1442 = vadd.f32 %v1186, %v1314
        %v1443 = vadd.f32 %v1187, %v1315
        %v1444 = vadd.f32 %v1188, %v1316
        %v1445 = vadd.f32 %v1189, %v1317
        %v1446 = vadd.f32 %v1190, %v1318
        %v1447 = vadd.f32 %v1191, %v1319
        %v1448 = vadd.f32 %v1192, %v1320
        %v1449 = vadd.f32 %v1193, %v1321
        %v1450 = vadd.f32 %v1194, %v1322
        %v1451 = vadd.f32 %v1195, %v1323
        %v1452 = vadd.f32 %v1196, %v1324
        %v1453 = vadd.f32 %v1197, %v1325
        %v1454 = vadd.f32 %v1198, %v1326
        %v1455 = vadd.f32 %v1199, %v1327
        %v1456 = vadd.f32 %v1200, %v1328
        %v1457 = vadd.f32 %v1201, %v1329
        %v1458 = vadd.f32 %v1202, %v1330
        %v1459 = vadd.f32 %v1203, %v1331
        %v1460 = vadd.f32 %v1204, %v1332
        %v1461 = vadd.f32 %v1205, %v1333
        %v1462 = vadd.f32 %v1206, %v1334
        %v1463 = vadd.f32 %v1207, %v1335
        %v1464 = vadd.f32 %v1208, %v1336
        %v1465 = vadd.f32 %v1209, %v1337
        %v1466 = vadd.f32 %v1210, %v1338
        %v1467 = vadd.f32 %v1211, %v1339
        %v1468 = vadd.f32 %v1212, %v1340
        %v1469 = vadd.f32 %v1213, %v1341
        %v1470 = vadd.f32 %v1214, %v1342
        %v1471 = vadd.f32 %v1215, %v1343
        %v1472 = vadd.f32 %v1216, %v1344
        %v1473 = vadd.f32 %v1217, %v1345
        %v1474 = vadd.f32 %v1218, %v1346
        %v1475 = vadd.f32 %v1219, %v1347
        %v1476 = vadd.f32 %v1220, %v1348
        %v1477 = vadd.f32 %v1221, %v1349
        %v1478 = vadd.f32 %v1222, %v1350
        %v1479 = vadd.f32 %v1223, %v1351
        %v1480 = vadd.f32 %v1224, %v1352
        %v1481 = vadd.f32 %v1225, %v1353
        %v1482 = vadd.f32 %v1226, %v1354
        %v1483 = vadd.f32 %v1227, %v1355
        %v1484 = vadd.f32 %v1228, %v1356
        %v1485 = vadd.f32 %v1229, %v1357
        %v1486 = vadd.f32 %v1230, %v1358
        %v1487 = vadd.f32 %v1231, %v1359
        %v1488 = vadd.f32 %v1232, %v1360
        %v1489 = vadd.f32 %v1233, %v1361
        %v1490 = vadd.f32 %v1234, %v1362
        %v1491 = vadd.f32 %v1235, %v1363
        %v1492 = vadd.f32 %v1236, %v1364
        %v1493 = vadd.f32 %v1237, %v1365
        %v1494 = vadd.f32 %v1238, %v1366
        %v1495 = vadd.f32 %v1239, %v1367
        %v1496 = vadd.f32 %v1240, %v1368
        %v1497 = vadd.f32 %v1241, %v1369
        %v1498 = vadd.f32 %v1242, %v1370
        %v1499 = vadd.f32 %v1243, %v1371
        %v1500 = vadd.f32 %v1244, %v1372
        %v1501 = vadd.f32 %v1245, %v1373
        %v1502 = vadd.f32 %v1246, %v1374
        %v1503 = vadd.f32 %v1247, %v1375
        %v1504 = vadd.f32 %v1248, %v1376
        %v1505 = vadd.f32 %v1249, %v1377
        %v1506 = vadd.f32 %v1250, %v1378
        %v1507 = vadd.f32 %v1251, %v1379
        %v1508 = vadd.f32 %v1252, %v1380
        %v1509 = vadd.f32 %v1253, %v1381
        %v1510 = vadd.f32 %v1254, %v1382
        %v1511 = vadd.f32 %v1255, %v1383
        %v1512 = vadd.f32 %v1256, %v1384
        %v1513 = vadd.f32 %v1257, %v1385
        %v1514 = vadd.f32 %v1258, %v1386
        %v1515 = vadd.f32 %v1259, %v1387
        %v1516 = vadd.f32 %v1260, %v1388
        %v1517 = vadd.f32 %v1261, %v1389
        %v1518 = vadd.f32 %v1262, %v1390
        %v1519 = vadd.f32 %v1263, %v1391
        %v1520 = vadd.f32 %v1264, %v1392
        %v1521 = vadd.f32 %v1265, %v1393
        %v1522 = vadd.f32 %v1266, %v1394
        %v1523 = vadd.f32 %v1267, %v1395
        %v1524 = vadd.f32 %v1268, %v1396
        %v1525 = vadd.f32 %v1269, %v1397
        %v1526 = vadd.f32 %v1270, %v1398
        %v1527 = vadd.f32 %v1271, %v1399
        %v1528 = vadd.f32 %v1272, %v1400
        %v1529 = vadd.f32 %v1273, %v1401
        %v1530 = vadd.f32 %v1274, %v1402
        %v1531 = vadd.f32 %v1275, %v1403
        %v1532 = vadd.f32 %v1276, %v1404
        %v1533 = vadd.f32 %v1277, %v1405
        %v1534 = vadd.f32 %v1278, %v1406
        %v1535 = vadd.f32 %v1279, %v1407
        %v1536 = vadd.f32 %v1280, %v1408
        %v1537 = vadd.f32 %v1281, %v1409
        %v1538 = vadd.f32 %v1282, %v1410
        %v1539 = vadd.f32 %v1283, %v1411
        %v1540 = vadd.f32 %v1284, %v1412
        %v1541 = vadd.f32 %v1285, %v1413
        %v1542 = vadd.f32 %v1286, %v1414
        %v1543 = vadd.f32 %v1287, %v1415
        %v1544 = vadd.f32 %v1288, %v1416
        %v1545 = vadd.f32 %v1289, %v1417
        %v1546 = vadd.f32 %v1290, %v1418
        %v1547 = vadd.f32 %v1291, %v1419
        %v1548 = vadd.f32 %v1292, %v1420
        %v1549 = vadd.f32 %v1293, %v1421
        %v1550 = vadd.f32 %v1294, %v1422
        %v1551 = vadd.f32 %v1295, %v1423
        %v1552 = vadd.f32 %v1296, %v1424
        %v1553 = vadd.f32 %v1297, %v1425
        %v1554 = vadd.f32 %v1298, %v1426
        %v1555 = vadd.f32 %v1299, %v1427
        %v1556 = vadd.f32 %v1300, %v1428
        %v1557 = vadd.f32 %v1301, %v1429
        %v1558 = vadd.f32 %v1302, %v1430
        %v1559 = vadd.f32 %v1303, %v1431
        %v1560 = vadd.f32 %v1304, %v1432
        %v1561 = vadd.f32 %v1305, %v1433
        %v1562 = vld [vmem:[%s133 + $0x6] sm:$0x1]
        %v1563 = vld [vmem:[%s133 + $0xe] sm:$0x1]
        %v1564 = vld [vmem:[%s133 + $0x16] sm:$0x1]
        %v1565 = vld [vmem:[%s133 + $0x1e] sm:$0x1]
        %v1566 = vld [vmem:[%s133 + $0x26] sm:$0x1]
        %v1567 = vld [vmem:[%s133 + $0x2e] sm:$0x1]
        %v1568 = vld [vmem:[%s133 + $0x36] sm:$0x1]
        %v1569 = vld [vmem:[%s133 + $0x3e] sm:$0x1]
        %v1570 = vld [vmem:[%s133 + $0x46] sm:$0x1]
        %v1571 = vld [vmem:[%s133 + $0x4e] sm:$0x1]
        %v1572 = vld [vmem:[%s133 + $0x56] sm:$0x1]
        %v1573 = vld [vmem:[%s133 + $0x5e] sm:$0x1]
        %v1574 = vld [vmem:[%s133 + $0x66] sm:$0x1]
        %v1575 = vld [vmem:[%s133 + $0x6e] sm:$0x1]
        %v1576 = vld [vmem:[%s133 + $0x76] sm:$0x1]
        %v1577 = vld [vmem:[%s133 + $0x7e] sm:$0x1]
        %v1578 = vld [vmem:[%s133 + $0x86] sm:$0x1]
        %v1579 = vld [vmem:[%s133 + $0x8e] sm:$0x1]
        %v1580 = vld [vmem:[%s133 + $0x96] sm:$0x1]
        %v1581 = vld [vmem:[%s133 + $0x9e] sm:$0x1]
        %v1582 = vld [vmem:[%s133 + $0xa6] sm:$0x1]
        %v1583 = vld [vmem:[%s133 + $0xae] sm:$0x1]
        %v1584 = vld [vmem:[%s133 + $0xb6] sm:$0x1]
        %v1585 = vld [vmem:[%s133 + $0xbe] sm:$0x1]
        %v1586 = vld [vmem:[%s133 + $0xc6] sm:$0x1]
        %v1587 = vld [vmem:[%s133 + $0xce] sm:$0x1]
        %v1588 = vld [vmem:[%s133 + $0xd6] sm:$0x1]
        %v1589 = vld [vmem:[%s133 + $0xde] sm:$0x1]
        %v1590 = vld [vmem:[%s133 + $0xe6] sm:$0x1]
        %v1591 = vld [vmem:[%s133 + $0xee] sm:$0x1]
        %v1592 = vld [vmem:[%s133 + $0xf6] sm:$0x1]
        %v1593 = vld [vmem:[%s133 + $0xfe] sm:$0x1]
        %v1594 = vld [vmem:[%s133 + $0x106] sm:$0x1]
        %v1595 = vld [vmem:[%s133 + $0x10e] sm:$0x1]
        %v1596 = vld [vmem:[%s133 + $0x116] sm:$0x1]
        %v1597 = vld [vmem:[%s133 + $0x11e] sm:$0x1]
        %v1598 = vld [vmem:[%s133 + $0x126] sm:$0x1]
        %v1599 = vld [vmem:[%s133 + $0x12e] sm:$0x1]
        %v1600 = vld [vmem:[%s133 + $0x136] sm:$0x1]
        %v1601 = vld [vmem:[%s133 + $0x13e] sm:$0x1]
        %v1602 = vld [vmem:[%s133 + $0x146] sm:$0x1]
        %v1603 = vld [vmem:[%s133 + $0x14e] sm:$0x1]
        %v1604 = vld [vmem:[%s133 + $0x156] sm:$0x1]
        %v1605 = vld [vmem:[%s133 + $0x15e] sm:$0x1]
        %v1606 = vld [vmem:[%s133 + $0x166] sm:$0x1]
        %v1607 = vld [vmem:[%s133 + $0x16e] sm:$0x1]
        %v1608 = vld [vmem:[%s133 + $0x176] sm:$0x1]
        %v1609 = vld [vmem:[%s133 + $0x17e] sm:$0x1]
        %v1610 = vld [vmem:[%s133 + $0x186] sm:$0x1]
        %v1611 = vld [vmem:[%s133 + $0x18e] sm:$0x1]
        %v1612 = vld [vmem:[%s133 + $0x196] sm:$0x1]
        %v1613 = vld [vmem:[%s133 + $0x19e] sm:$0x1]
        %v1614 = vld [vmem:[%s133 + $0x1a6] sm:$0x1]
        %v1615 = vld [vmem:[%s133 + $0x1ae] sm:$0x1]
        %v1616 = vld [vmem:[%s133 + $0x1b6] sm:$0x1]
        %v1617 = vld [vmem:[%s133 + $0x1be] sm:$0x1]
        %v1618 = vld [vmem:[%s133 + $0x1c6] sm:$0x1]
        %v1619 = vld [vmem:[%s133 + $0x1ce] sm:$0x1]
        %v1620 = vld [vmem:[%s133 + $0x1d6] sm:$0x1]
        %v1621 = vld [vmem:[%s133 + $0x1de] sm:$0x1]
        %v1622 = vld [vmem:[%s133 + $0x1e6] sm:$0x1]
        %v1623 = vld [vmem:[%s133 + $0x1ee] sm:$0x1]
        %v1624 = vld [vmem:[%s133 + $0x1f6] sm:$0x1]
        %v1625 = vld [vmem:[%s133 + $0x1fe] sm:$0x1]
        %v1626 = vld [vmem:[%s133 + $0x206] sm:$0x1]
        %v1627 = vld [vmem:[%s133 + $0x20e] sm:$0x1]
        %v1628 = vld [vmem:[%s133 + $0x216] sm:$0x1]
        %v1629 = vld [vmem:[%s133 + $0x21e] sm:$0x1]
        %v1630 = vld [vmem:[%s133 + $0x226] sm:$0x1]
        %v1631 = vld [vmem:[%s133 + $0x22e] sm:$0x1]
        %v1632 = vld [vmem:[%s133 + $0x236] sm:$0x1]
        %v1633 = vld [vmem:[%s133 + $0x23e] sm:$0x1]
        %v1634 = vld [vmem:[%s133 + $0x246] sm:$0x1]
        %v1635 = vld [vmem:[%s133 + $0x24e] sm:$0x1]
        %v1636 = vld [vmem:[%s133 + $0x256] sm:$0x1]
        %v1637 = vld [vmem:[%s133 + $0x25e] sm:$0x1]
        %v1638 = vld [vmem:[%s133 + $0x266] sm:$0x1]
        %v1639 = vld [vmem:[%s133 + $0x26e] sm:$0x1]
        %v1640 = vld [vmem:[%s133 + $0x276] sm:$0x1]
        %v1641 = vld [vmem:[%s133 + $0x27e] sm:$0x1]
        %v1642 = vld [vmem:[%s133 + $0x286] sm:$0x1]
        %v1643 = vld [vmem:[%s133 + $0x28e] sm:$0x1]
        %v1644 = vld [vmem:[%s133 + $0x296] sm:$0x1]
        %v1645 = vld [vmem:[%s133 + $0x29e] sm:$0x1]
        %v1646 = vld [vmem:[%s133 + $0x2a6] sm:$0x1]
        %v1647 = vld [vmem:[%s133 + $0x2ae] sm:$0x1]
        %v1648 = vld [vmem:[%s133 + $0x2b6] sm:$0x1]
        %v1649 = vld [vmem:[%s133 + $0x2be] sm:$0x1]
        %v1650 = vld [vmem:[%s133 + $0x2c6] sm:$0x1]
        %v1651 = vld [vmem:[%s133 + $0x2ce] sm:$0x1]
        %v1652 = vld [vmem:[%s133 + $0x2d6] sm:$0x1]
        %v1653 = vld [vmem:[%s133 + $0x2de] sm:$0x1]
        %v1654 = vld [vmem:[%s133 + $0x2e6] sm:$0x1]
        %v1655 = vld [vmem:[%s133 + $0x2ee] sm:$0x1]
        %v1656 = vld [vmem:[%s133 + $0x2f6] sm:$0x1]
        %v1657 = vld [vmem:[%s133 + $0x2fe] sm:$0x1]
        %v1658 = vld [vmem:[%s133 + $0x306] sm:$0x1]
        %v1659 = vld [vmem:[%s133 + $0x30e] sm:$0x1]
        %v1660 = vld [vmem:[%s133 + $0x316] sm:$0x1]
        %v1661 = vld [vmem:[%s133 + $0x31e] sm:$0x1]
        %v1662 = vld [vmem:[%s133 + $0x326] sm:$0x1]
        %v1663 = vld [vmem:[%s133 + $0x32e] sm:$0x1]
        %v1664 = vld [vmem:[%s133 + $0x336] sm:$0x1]
        %v1665 = vld [vmem:[%s133 + $0x33e] sm:$0x1]
        %v1666 = vld [vmem:[%s133 + $0x346] sm:$0x1]
        %v1667 = vld [vmem:[%s133 + $0x34e] sm:$0x1]
        %v1668 = vld [vmem:[%s133 + $0x356] sm:$0x1]
        %v1669 = vld [vmem:[%s133 + $0x35e] sm:$0x1]
        %v1670 = vld [vmem:[%s133 + $0x366] sm:$0x1]
        %v1671 = vld [vmem:[%s133 + $0x36e] sm:$0x1]
        %v1672 = vld [vmem:[%s133 + $0x376] sm:$0x1]
        %v1673 = vld [vmem:[%s133 + $0x37e] sm:$0x1]
        %v1674 = vld [vmem:[%s133 + $0x386] sm:$0x1]
        %v1675 = vld [vmem:[%s133 + $0x38e] sm:$0x1]
        %v1676 = vld [vmem:[%s133 + $0x396] sm:$0x1]
        %v1677 = vld [vmem:[%s133 + $0x39e] sm:$0x1]
        %v1678 = vld [vmem:[%s133 + $0x3a6] sm:$0x1]
        %v1679 = vld [vmem:[%s133 + $0x3ae] sm:$0x1]
        %v1680 = vld [vmem:[%s133 + $0x3b6] sm:$0x1]
        %v1681 = vld [vmem:[%s133 + $0x3be] sm:$0x1]
        %v1682 = vld [vmem:[%s133 + $0x3c6] sm:$0x1]
        %v1683 = vld [vmem:[%s133 + $0x3ce] sm:$0x1]
        %v1684 = vld [vmem:[%s133 + $0x3d6] sm:$0x1]
        %v1685 = vld [vmem:[%s133 + $0x3de] sm:$0x1]
        %v1686 = vld [vmem:[%s133 + $0x3e6] sm:$0x1]
        %v1687 = vld [vmem:[%s133 + $0x3ee] sm:$0x1]
        %v1688 = vld [vmem:[%s133 + $0x3f6] sm:$0x1]
        %v1689 = vld [vmem:[%s133 + $0x3fe] sm:$0x1]
        %v1690 = vadd.f32 %v1434, %v1562
        %v1691 = vadd.f32 %v1435, %v1563
        %v1692 = vadd.f32 %v1436, %v1564
        %v1693 = vadd.f32 %v1437, %v1565
        %v1694 = vadd.f32 %v1438, %v1566
        %v1695 = vadd.f32 %v1439, %v1567
        %v1696 = vadd.f32 %v1440, %v1568
        %v1697 = vadd.f32 %v1441, %v1569
        %v1698 = vadd.f32 %v1442, %v1570
        %v1699 = vadd.f32 %v1443, %v1571
        %v1700 = vadd.f32 %v1444, %v1572
        %v1701 = vadd.f32 %v1445, %v1573
        %v1702 = vadd.f32 %v1446, %v1574
        %v1703 = vadd.f32 %v1447, %v1575
        %v1704 = vadd.f32 %v1448, %v1576
        %v1705 = vadd.f32 %v1449, %v1577
        %v1706 = vadd.f32 %v1450, %v1578
        %v1707 = vadd.f32 %v1451, %v1579
        %v1708 = vadd.f32 %v1452, %v1580
        %v1709 = vadd.f32 %v1453, %v1581
        %v1710 = vadd.f32 %v1454, %v1582
        %v1711 = vadd.f32 %v1455, %v1583
        %v1712 = vadd.f32 %v1456, %v1584
        %v1713 = vadd.f32 %v1457, %v1585
        %v1714 = vadd.f32 %v1458, %v1586
        %v1715 = vadd.f32 %v1459, %v1587
        %v1716 = vadd.f32 %v1460, %v1588
        %v1717 = vadd.f32 %v1461, %v1589
        %v1718 = vadd.f32 %v1462, %v1590
        %v1719 = vadd.f32 %v1463, %v1591
        %v1720 = vadd.f32 %v1464, %v1592
        %v1721 = vadd.f32 %v1465, %v1593
        %v1722 = vadd.f32 %v1466, %v1594
        %v1723 = vadd.f32 %v1467, %v1595
        %v1724 = vadd.f32 %v1468, %v1596
        %v1725 = vadd.f32 %v1469, %v1597
        %v1726 = vadd.f32 %v1470, %v1598
        %v1727 = vadd.f32 %v1471, %v1599
        %v1728 = vadd.f32 %v1472, %v1600
        %v1729 = vadd.f32 %v1473, %v1601
        %v1730 = vadd.f32 %v1474, %v1602
        %v1731 = vadd.f32 %v1475, %v1603
        %v1732 = vadd.f32 %v1476, %v1604
        %v1733 = vadd.f32 %v1477, %v1605
        %v1734 = vadd.f32 %v1478, %v1606
        %v1735 = vadd.f32 %v1479, %v1607
        %v1736 = vadd.f32 %v1480, %v1608
        %v1737 = vadd.f32 %v1481, %v1609
        %v1738 = vadd.f32 %v1482, %v1610
        %v1739 = vadd.f32 %v1483, %v1611
        %v1740 = vadd.f32 %v1484, %v1612
        %v1741 = vadd.f32 %v1485, %v1613
        %v1742 = vadd.f32 %v1486, %v1614
        %v1743 = vadd.f32 %v1487, %v1615
        %v1744 = vadd.f32 %v1488, %v1616
        %v1745 = vadd.f32 %v1489, %v1617
        %v1746 = vadd.f32 %v1490, %v1618
        %v1747 = vadd.f32 %v1491, %v1619
        %v1748 = vadd.f32 %v1492, %v1620
        %v1749 = vadd.f32 %v1493, %v1621
        %v1750 = vadd.f32 %v1494, %v1622
        %v1751 = vadd.f32 %v1495, %v1623
        %v1752 = vadd.f32 %v1496, %v1624
        %v1753 = vadd.f32 %v1497, %v1625
        %v1754 = vadd.f32 %v1498, %v1626
        %v1755 = vadd.f32 %v1499, %v1627
        %v1756 = vadd.f32 %v1500, %v1628
        %v1757 = vadd.f32 %v1501, %v1629
        %v1758 = vadd.f32 %v1502, %v1630
        %v1759 = vadd.f32 %v1503, %v1631
        %v1760 = vadd.f32 %v1504, %v1632
        %v1761 = vadd.f32 %v1505, %v1633
        %v1762 = vadd.f32 %v1506, %v1634
        %v1763 = vadd.f32 %v1507, %v1635
        %v1764 = vadd.f32 %v1508, %v1636
        %v1765 = vadd.f32 %v1509, %v1637
        %v1766 = vadd.f32 %v1510, %v1638
        %v1767 = vadd.f32 %v1511, %v1639
        %v1768 = vadd.f32 %v1512, %v1640
        %v1769 = vadd.f32 %v1513, %v1641
        %v1770 = vadd.f32 %v1514, %v1642
        %v1771 = vadd.f32 %v1515, %v1643
        %v1772 = vadd.f32 %v1516, %v1644
        %v1773 = vadd.f32 %v1517, %v1645
        %v1774 = vadd.f32 %v1518, %v1646
        %v1775 = vadd.f32 %v1519, %v1647
        %v1776 = vadd.f32 %v1520, %v1648
        %v1777 = vadd.f32 %v1521, %v1649
        %v1778 = vadd.f32 %v1522, %v1650
        %v1779 = vadd.f32 %v1523, %v1651
        %v1780 = vadd.f32 %v1524, %v1652
        %v1781 = vadd.f32 %v1525, %v1653
        %v1782 = vadd.f32 %v1526, %v1654
        %v1783 = vadd.f32 %v1527, %v1655
        %v1784 = vadd.f32 %v1528, %v1656
        %v1785 = vadd.f32 %v1529, %v1657
        %v1786 = vadd.f32 %v1530, %v1658
        %v1787 = vadd.f32 %v1531, %v1659
        %v1788 = vadd.f32 %v1532, %v1660
        %v1789 = vadd.f32 %v1533, %v1661
        %v1790 = vadd.f32 %v1534, %v1662
        %v1791 = vadd.f32 %v1535, %v1663
        %v1792 = vadd.f32 %v1536, %v1664
        %v1793 = vadd.f32 %v1537, %v1665
        %v1794 = vadd.f32 %v1538, %v1666
        %v1795 = vadd.f32 %v1539, %v1667
        %v1796 = vadd.f32 %v1540, %v1668
        %v1797 = vadd.f32 %v1541, %v1669
        %v1798 = vadd.f32 %v1542, %v1670
        %v1799 = vadd.f32 %v1543, %v1671
        %v1800 = vadd.f32 %v1544, %v1672
        %v1801 = vadd.f32 %v1545, %v1673
        %v1802 = vadd.f32 %v1546, %v1674
        %v1803 = vadd.f32 %v1547, %v1675
        %v1804 = vadd.f32 %v1548, %v1676
        %v1805 = vadd.f32 %v1549, %v1677
        %v1806 = vadd.f32 %v1550, %v1678
        %v1807 = vadd.f32 %v1551, %v1679
        %v1808 = vadd.f32 %v1552, %v1680
        %v1809 = vadd.f32 %v1553, %v1681
        %v1810 = vadd.f32 %v1554, %v1682
        %v1811 = vadd.f32 %v1555, %v1683
        %v1812 = vadd.f32 %v1556, %v1684
        %v1813 = vadd.f32 %v1557, %v1685
        %v1814 = vadd.f32 %v1558, %v1686
        %v1815 = vadd.f32 %v1559, %v1687
        %v1816 = vadd.f32 %v1560, %v1688
        %v1817 = vadd.f32 %v1561, %v1689
        %v1818 = vld [vmem:[%s133 + $0x7] sm:$0x1]
        %v1819 = vld [vmem:[%s133 + $0xf] sm:$0x1]
        %v1820 = vld [vmem:[%s133 + $0x17] sm:$0x1]
        %v1821 = vld [vmem:[%s133 + $0x1f] sm:$0x1]
        %v1822 = vld [vmem:[%s133 + $0x27] sm:$0x1]
        %v1823 = vld [vmem:[%s133 + $0x2f] sm:$0x1]
        %v1824 = vld [vmem:[%s133 + $0x37] sm:$0x1]
        %v1825 = vld [vmem:[%s133 + $0x3f] sm:$0x1]
        %v1826 = vld [vmem:[%s133 + $0x47] sm:$0x1]
        %v1827 = vld [vmem:[%s133 + $0x4f] sm:$0x1]
        %v1828 = vld [vmem:[%s133 + $0x57] sm:$0x1]
        %v1829 = vld [vmem:[%s133 + $0x5f] sm:$0x1]
        %v1830 = vld [vmem:[%s133 + $0x67] sm:$0x1]
        %v1831 = vld [vmem:[%s133 + $0x6f] sm:$0x1]
        %v1832 = vld [vmem:[%s133 + $0x77] sm:$0x1]
        %v1833 = vld [vmem:[%s133 + $0x7f] sm:$0x1]
        %v1834 = vld [vmem:[%s133 + $0x87] sm:$0x1]
        %v1835 = vld [vmem:[%s133 + $0x8f] sm:$0x1]
        %v1836 = vld [vmem:[%s133 + $0x97] sm:$0x1]
        %v1837 = vld [vmem:[%s133 + $0x9f] sm:$0x1]
        %v1838 = vld [vmem:[%s133 + $0xa7] sm:$0x1]
        %v1839 = vld [vmem:[%s133 + $0xaf] sm:$0x1]
        %v1840 = vld [vmem:[%s133 + $0xb7] sm:$0x1]
        %v1841 = vld [vmem:[%s133 + $0xbf] sm:$0x1]
        %v1842 = vld [vmem:[%s133 + $0xc7] sm:$0x1]
        %v1843 = vld [vmem:[%s133 + $0xcf] sm:$0x1]
        %v1844 = vld [vmem:[%s133 + $0xd7] sm:$0x1]
        %v1845 = vld [vmem:[%s133 + $0xdf] sm:$0x1]
        %v1846 = vld [vmem:[%s133 + $0xe7] sm:$0x1]
        %v1847 = vld [vmem:[%s133 + $0xef] sm:$0x1]
        %v1848 = vld [vmem:[%s133 + $0xf7] sm:$0x1]
        %v1849 = vld [vmem:[%s133 + $0xff] sm:$0x1]
        %v1850 = vld [vmem:[%s133 + $0x107] sm:$0x1]
        %v1851 = vld [vmem:[%s133 + $0x10f] sm:$0x1]
        %v1852 = vld [vmem:[%s133 + $0x117] sm:$0x1]
        %v1853 = vld [vmem:[%s133 + $0x11f] sm:$0x1]
        %v1854 = vld [vmem:[%s133 + $0x127] sm:$0x1]
        %v1855 = vld [vmem:[%s133 + $0x12f] sm:$0x1]
        %v1856 = vld [vmem:[%s133 + $0x137] sm:$0x1]
        %v1857 = vld [vmem:[%s133 + $0x13f] sm:$0x1]
        %v1858 = vld [vmem:[%s133 + $0x147] sm:$0x1]
        %v1859 = vld [vmem:[%s133 + $0x14f] sm:$0x1]
        %v1860 = vld [vmem:[%s133 + $0x157] sm:$0x1]
        %v1861 = vld [vmem:[%s133 + $0x15f] sm:$0x1]
        %v1862 = vld [vmem:[%s133 + $0x167] sm:$0x1]
        %v1863 = vld [vmem:[%s133 + $0x16f] sm:$0x1]
        %v1864 = vld [vmem:[%s133 + $0x177] sm:$0x1]
        %v1865 = vld [vmem:[%s133 + $0x17f] sm:$0x1]
        %v1866 = vld [vmem:[%s133 + $0x187] sm:$0x1]
        %v1867 = vld [vmem:[%s133 + $0x18f] sm:$0x1]
        %v1868 = vld [vmem:[%s133 + $0x197] sm:$0x1]
        %v1869 = vld [vmem:[%s133 + $0x19f] sm:$0x1]
        %v1870 = vld [vmem:[%s133 + $0x1a7] sm:$0x1]
        %v1871 = vld [vmem:[%s133 + $0x1af] sm:$0x1]
        %v1872 = vld [vmem:[%s133 + $0x1b7] sm:$0x1]
        %v1873 = vld [vmem:[%s133 + $0x1bf] sm:$0x1]
        %v1874 = vld [vmem:[%s133 + $0x1c7] sm:$0x1]
        %v1875 = vld [vmem:[%s133 + $0x1cf] sm:$0x1]
        %v1876 = vld [vmem:[%s133 + $0x1d7] sm:$0x1]
        %v1877 = vld [vmem:[%s133 + $0x1df] sm:$0x1]
        %v1878 = vld [vmem:[%s133 + $0x1e7] sm:$0x1]
        %v1879 = vld [vmem:[%s133 + $0x1ef] sm:$0x1]
        %v1880 = vld [vmem:[%s133 + $0x1f7] sm:$0x1]
        %v1881 = vld [vmem:[%s133 + $0x1ff] sm:$0x1]
        %v1882 = vld [vmem:[%s133 + $0x207] sm:$0x1]
        %v1883 = vld [vmem:[%s133 + $0x20f] sm:$0x1]
        %v1884 = vld [vmem:[%s133 + $0x217] sm:$0x1]
        %v1885 = vld [vmem:[%s133 + $0x21f] sm:$0x1]
        %v1886 = vld [vmem:[%s133 + $0x227] sm:$0x1]
        %v1887 = vld [vmem:[%s133 + $0x22f] sm:$0x1]
        %v1888 = vld [vmem:[%s133 + $0x237] sm:$0x1]
        %v1889 = vld [vmem:[%s133 + $0x23f] sm:$0x1]
        %v1890 = vld [vmem:[%s133 + $0x247] sm:$0x1]
        %v1891 = vld [vmem:[%s133 + $0x24f] sm:$0x1]
        %v1892 = vld [vmem:[%s133 + $0x257] sm:$0x1]
        %v1893 = vld [vmem:[%s133 + $0x25f] sm:$0x1]
        %v1894 = vld [vmem:[%s133 + $0x267] sm:$0x1]
        %v1895 = vld [vmem:[%s133 + $0x26f] sm:$0x1]
        %v1896 = vld [vmem:[%s133 + $0x277] sm:$0x1]
        %v1897 = vld [vmem:[%s133 + $0x27f] sm:$0x1]
        %v1898 = vld [vmem:[%s133 + $0x287] sm:$0x1]
        %v1899 = vld [vmem:[%s133 + $0x28f] sm:$0x1]
        %v1900 = vld [vmem:[%s133 + $0x297] sm:$0x1]
        %v1901 = vld [vmem:[%s133 + $0x29f] sm:$0x1]
        %v1902 = vld [vmem:[%s133 + $0x2a7] sm:$0x1]
        %v1903 = vld [vmem:[%s133 + $0x2af] sm:$0x1]
        %v1904 = vld [vmem:[%s133 + $0x2b7] sm:$0x1]
        %v1905 = vld [vmem:[%s133 + $0x2bf] sm:$0x1]
        %v1906 = vld [vmem:[%s133 + $0x2c7] sm:$0x1]
        %v1907 = vld [vmem:[%s133 + $0x2cf] sm:$0x1]
        %v1908 = vld [vmem:[%s133 + $0x2d7] sm:$0x1]
        %v1909 = vld [vmem:[%s133 + $0x2df] sm:$0x1]
        %v1910 = vld [vmem:[%s133 + $0x2e7] sm:$0x1]
        %v1911 = vld [vmem:[%s133 + $0x2ef] sm:$0x1]
        %v1912 = vld [vmem:[%s133 + $0x2f7] sm:$0x1]
        %v1913 = vld [vmem:[%s133 + $0x2ff] sm:$0x1]
        %v1914 = vld [vmem:[%s133 + $0x307] sm:$0x1]
        %v1915 = vld [vmem:[%s133 + $0x30f] sm:$0x1]
        %v1916 = vld [vmem:[%s133 + $0x317] sm:$0x1]
        %v1917 = vld [vmem:[%s133 + $0x31f] sm:$0x1]
        %v1918 = vld [vmem:[%s133 + $0x327] sm:$0x1]
        %v1919 = vld [vmem:[%s133 + $0x32f] sm:$0x1]
        %v1920 = vld [vmem:[%s133 + $0x337] sm:$0x1]
        %v1921 = vld [vmem:[%s133 + $0x33f] sm:$0x1]
        %v1922 = vld [vmem:[%s133 + $0x347] sm:$0x1]
        %v1923 = vld [vmem:[%s133 + $0x34f] sm:$0x1]
        %v1924 = vld [vmem:[%s133 + $0x357] sm:$0x1]
        %v1925 = vld [vmem:[%s133 + $0x35f] sm:$0x1]
        %v1926 = vld [vmem:[%s133 + $0x367] sm:$0x1]
        %v1927 = vld [vmem:[%s133 + $0x36f] sm:$0x1]
        %v1928 = vld [vmem:[%s133 + $0x377] sm:$0x1]
        %v1929 = vld [vmem:[%s133 + $0x37f] sm:$0x1]
        %v1930 = vld [vmem:[%s133 + $0x387] sm:$0x1]
        %v1931 = vld [vmem:[%s133 + $0x38f] sm:$0x1]
        %v1932 = vld [vmem:[%s133 + $0x397] sm:$0x1]
        %v1933 = vld [vmem:[%s133 + $0x39f] sm:$0x1]
        %v1934 = vld [vmem:[%s133 + $0x3a7] sm:$0x1]
        %v1935 = vld [vmem:[%s133 + $0x3af] sm:$0x1]
        %v1936 = vld [vmem:[%s133 + $0x3b7] sm:$0x1]
        %v1937 = vld [vmem:[%s133 + $0x3bf] sm:$0x1]
        %v1938 = vld [vmem:[%s133 + $0x3c7] sm:$0x1]
        %v1939 = vld [vmem:[%s133 + $0x3cf] sm:$0x1]
        %v1940 = vld [vmem:[%s133 + $0x3d7] sm:$0x1]
        %v1941 = vld [vmem:[%s133 + $0x3df] sm:$0x1]
        %v1942 = vld [vmem:[%s133 + $0x3e7] sm:$0x1]
        %v1943 = vld [vmem:[%s133 + $0x3ef] sm:$0x1]
        %v1944 = vld [vmem:[%s133 + $0x3f7] sm:$0x1]
        %v1945 = vld [vmem:[%s133 + $0x3ff] sm:$0x1]
        %v1946 = vadd.f32 %v1690, %v1818
        %v1947 = vadd.f32 %v1691, %v1819
        %v1948 = vadd.f32 %v1692, %v1820
        %v1949 = vadd.f32 %v1693, %v1821
        %v1950 = vadd.f32 %v1694, %v1822
        %v1951 = vadd.f32 %v1695, %v1823
        %v1952 = vadd.f32 %v1696, %v1824
        %v1953 = vadd.f32 %v1697, %v1825
        %v1954 = vadd.f32 %v1698, %v1826
        %v1955 = vadd.f32 %v1699, %v1827
        %v1956 = vadd.f32 %v1700, %v1828
        %v1957 = vadd.f32 %v1701, %v1829
        %v1958 = vadd.f32 %v1702, %v1830
        %v1959 = vadd.f32 %v1703, %v1831
        %v1960 = vadd.f32 %v1704, %v1832
        %v1961 = vadd.f32 %v1705, %v1833
        %v1962 = vadd.f32 %v1706, %v1834
        %v1963 = vadd.f32 %v1707, %v1835
        %v1964 = vadd.f32 %v1708, %v1836
        %v1965 = vadd.f32 %v1709, %v1837
        %v1966 = vadd.f32 %v1710, %v1838
        %v1967 = vadd.f32 %v1711, %v1839
        %v1968 = vadd.f32 %v1712, %v1840
        %v1969 = vadd.f32 %v1713, %v1841
        %v1970 = vadd.f32 %v1714, %v1842
        %v1971 = vadd.f32 %v1715, %v1843
        %v1972 = vadd.f32 %v1716, %v1844
        %v1973 = vadd.f32 %v1717, %v1845
        %v1974 = vadd.f32 %v1718, %v1846
        %v1975 = vadd.f32 %v1719, %v1847
        %v1976 = vadd.f32 %v1720, %v1848
        %v1977 = vadd.f32 %v1721, %v1849
        %v1978 = vadd.f32 %v1722, %v1850
        %v1979 = vadd.f32 %v1723, %v1851
        %v1980 = vadd.f32 %v1724, %v1852
        %v1981 = vadd.f32 %v1725, %v1853
        %v1982 = vadd.f32 %v1726, %v1854
        %v1983 = vadd.f32 %v1727, %v1855
        %v1984 = vadd.f32 %v1728, %v1856
        %v1985 = vadd.f32 %v1729, %v1857
        %v1986 = vadd.f32 %v1730, %v1858
        %v1987 = vadd.f32 %v1731, %v1859
        %v1988 = vadd.f32 %v1732, %v1860
        %v1989 = vadd.f32 %v1733, %v1861
        %v1990 = vadd.f32 %v1734, %v1862
        %v1991 = vadd.f32 %v1735, %v1863
        %v1992 = vadd.f32 %v1736, %v1864
        %v1993 = vadd.f32 %v1737, %v1865
        %v1994 = vadd.f32 %v1738, %v1866
        %v1995 = vadd.f32 %v1739, %v1867
        %v1996 = vadd.f32 %v1740, %v1868
        %v1997 = vadd.f32 %v1741, %v1869
        %v1998 = vadd.f32 %v1742, %v1870
        %v1999 = vadd.f32 %v1743, %v1871
        %v2000 = vadd.f32 %v1744, %v1872
        %v2001 = vadd.f32 %v1745, %v1873
        %v2002 = vadd.f32 %v1746, %v1874
        %v2003 = vadd.f32 %v1747, %v1875
        %v2004 = vadd.f32 %v1748, %v1876
        %v2005 = vadd.f32 %v1749, %v1877
        %v2006 = vadd.f32 %v1750, %v1878
        %v2007 = vadd.f32 %v1751, %v1879
        %v2008 = vadd.f32 %v1752, %v1880
        %v2009 = vadd.f32 %v1753, %v1881
        %v2010 = vadd.f32 %v1754, %v1882
        %v2011 = vadd.f32 %v1755, %v1883
        %v2012 = vadd.f32 %v1756, %v1884
        %v2013 = vadd.f32 %v1757, %v1885
        %v2014 = vadd.f32 %v1758, %v1886
        %v2015 = vadd.f32 %v1759, %v1887
        %v2016 = vadd.f32 %v1760, %v1888
        %v2017 = vadd.f32 %v1761, %v1889
        %v2018 = vadd.f32 %v1762, %v1890
        %v2019 = vadd.f32 %v1763, %v1891
        %v2020 = vadd.f32 %v1764, %v1892
        %v2021 = vadd.f32 %v1765, %v1893
        %v2022 = vadd.f32 %v1766, %v1894
        %v2023 = vadd.f32 %v1767, %v1895
        %v2024 = vadd.f32 %v1768, %v1896
        %v2025 = vadd.f32 %v1769, %v1897
        %v2026 = vadd.f32 %v1770, %v1898
        %v2027 = vadd.f32 %v1771, %v1899
        %v2028 = vadd.f32 %v1772, %v1900
        %v2029 = vadd.f32 %v1773, %v1901
        %v2030 = vadd.f32 %v1774, %v1902
        %v2031 = vadd.f32 %v1775, %v1903
        %v2032 = vadd.f32 %v1776, %v1904
        %v2033 = vadd.f32 %v1777, %v1905
        %v2034 = vadd.f32 %v1778, %v1906
        %v2035 = vadd.f32 %v1779, %v1907
        %v2036 = vadd.f32 %v1780, %v1908
        %v2037 = vadd.f32 %v1781, %v1909
        %v2038 = vadd.f32 %v1782, %v1910
        %v2039 = vadd.f32 %v1783, %v1911
        %v2040 = vadd.f32 %v1784, %v1912
        %v2041 = vadd.f32 %v1785, %v1913
        %v2042 = vadd.f32 %v1786, %v1914
        %v2043 = vadd.f32 %v1787, %v1915
        %v2044 = vadd.f32 %v1788, %v1916
        %v2045 = vadd.f32 %v1789, %v1917
        %v2046 = vadd.f32 %v1790, %v1918
        %v2047 = vadd.f32 %v1791, %v1919
        %v2048 = vadd.f32 %v1792, %v1920
        %v2049 = vadd.f32 %v1793, %v1921
        %v2050 = vadd.f32 %v1794, %v1922
        %v2051 = vadd.f32 %v1795, %v1923
        %v2052 = vadd.f32 %v1796, %v1924
        %v2053 = vadd.f32 %v1797, %v1925
        %v2054 = vadd.f32 %v1798, %v1926
        %v2055 = vadd.f32 %v1799, %v1927
        %v2056 = vadd.f32 %v1800, %v1928
        %v2057 = vadd.f32 %v1801, %v1929
        %v2058 = vadd.f32 %v1802, %v1930
        %v2059 = vadd.f32 %v1803, %v1931
        %v2060 = vadd.f32 %v1804, %v1932
        %v2061 = vadd.f32 %v1805, %v1933
        %v2062 = vadd.f32 %v1806, %v1934
        %v2063 = vadd.f32 %v1807, %v1935
        %v2064 = vadd.f32 %v1808, %v1936
        %v2065 = vadd.f32 %v1809, %v1937
        %v2066 = vadd.f32 %v1810, %v1938
        %v2067 = vadd.f32 %v1811, %v1939
        %v2068 = vadd.f32 %v1812, %v1940
        %v2069 = vadd.f32 %v1813, %v1941
        %v2070 = vadd.f32 %v1814, %v1942
        %v2071 = vadd.f32 %v1815, %v1943
        %v2072 = vadd.f32 %v1816, %v1944
        %v2073 = vadd.f32 %v1817, %v1945
        %v2074 = vmul.f32 %v1946, 0.125
        %v2075 = vmul.f32 %v1947, 0.125
        %v2076 = vmul.f32 %v1948, 0.125
        %v2077 = vmul.f32 %v1949, 0.125
        %v2078 = vmul.f32 %v1950, 0.125
        %v2079 = vmul.f32 %v1951, 0.125
        %v2080 = vmul.f32 %v1952, 0.125
        %v2081 = vmul.f32 %v1953, 0.125
        %v2082 = vmul.f32 %v1954, 0.125
        %v2083 = vmul.f32 %v1955, 0.125
        %v2084 = vmul.f32 %v1956, 0.125
        %v2085 = vmul.f32 %v1957, 0.125
        %v2086 = vmul.f32 %v1958, 0.125
        %v2087 = vmul.f32 %v1959, 0.125
        %v2088 = vmul.f32 %v1960, 0.125
        %v2089 = vmul.f32 %v1961, 0.125
        %v2090 = vmul.f32 %v1962, 0.125
        %v2091 = vmul.f32 %v1963, 0.125
        %v2092 = vmul.f32 %v1964, 0.125
        %v2093 = vmul.f32 %v1965, 0.125
        %v2094 = vmul.f32 %v1966, 0.125
        %v2095 = vmul.f32 %v1967, 0.125
        %v2096 = vmul.f32 %v1968, 0.125
        %v2097 = vmul.f32 %v1969, 0.125
        %v2098 = vmul.f32 %v1970, 0.125
        %v2099 = vmul.f32 %v1971, 0.125
        %v2100 = vmul.f32 %v1972, 0.125
        %v2101 = vmul.f32 %v1973, 0.125
        %v2102 = vmul.f32 %v1974, 0.125
        %v2103 = vmul.f32 %v1975, 0.125
        %v2104 = vmul.f32 %v1976, 0.125
        %v2105 = vmul.f32 %v1977, 0.125
        %v2106 = vmul.f32 %v1978, 0.125
        %v2107 = vmul.f32 %v1979, 0.125
        %v2108 = vmul.f32 %v1980, 0.125
        %v2109 = vmul.f32 %v1981, 0.125
        %v2110 = vmul.f32 %v1982, 0.125
        %v2111 = vmul.f32 %v1983, 0.125
        %v2112 = vmul.f32 %v1984, 0.125
        %v2113 = vmul.f32 %v1985, 0.125
        %v2114 = vmul.f32 %v1986, 0.125
        %v2115 = vmul.f32 %v1987, 0.125
        %v2116 = vmul.f32 %v1988, 0.125
        %v2117 = vmul.f32 %v1989, 0.125
        %v2118 = vmul.f32 %v1990, 0.125
        %v2119 = vmul.f32 %v1991, 0.125
        %v2120 = vmul.f32 %v1992, 0.125
        %v2121 = vmul.f32 %v1993, 0.125
        %v2122 = vmul.f32 %v1994, 0.125
        %v2123 = vmul.f32 %v1995, 0.125
        %v2124 = vmul.f32 %v1996, 0.125
        %v2125 = vmul.f32 %v1997, 0.125
        %v2126 = vmul.f32 %v1998, 0.125
        %v2127 = vmul.f32 %v1999, 0.125
        %v2128 = vmul.f32 %v2000, 0.125
        %v2129 = vmul.f32 %v2001, 0.125
        %v2130 = vmul.f32 %v2002, 0.125
        %v2131 = vmul.f32 %v2003, 0.125
        %v2132 = vmul.f32 %v2004, 0.125
        %v2133 = vmul.f32 %v2005, 0.125
        %v2134 = vmul.f32 %v2006, 0.125
        %v2135 = vmul.f32 %v2007, 0.125
        %v2136 = vmul.f32 %v2008, 0.125
        %v2137 = vmul.f32 %v2009, 0.125
        %v2138 = vmul.f32 %v2010, 0.125
        %v2139 = vmul.f32 %v2011, 0.125
        %v2140 = vmul.f32 %v2012, 0.125
        %v2141 = vmul.f32 %v2013, 0.125
        %v2142 = vmul.f32 %v2014, 0.125
        %v2143 = vmul.f32 %v2015, 0.125
        %v2144 = vmul.f32 %v2016, 0.125
        %v2145 = vmul.f32 %v2017, 0.125
        %v2146 = vmul.f32 %v2018, 0.125
        %v2147 = vmul.f32 %v2019, 0.125
        %v2148 = vmul.f32 %v2020, 0.125
        %v2149 = vmul.f32 %v2021, 0.125
        %v2150 = vmul.f32 %v2022, 0.125
        %v2151 = vmul.f32 %v2023, 0.125
        %v2152 = vmul.f32 %v2024, 0.125
        %v2153 = vmul.f32 %v2025, 0.125
        %v2154 = vmul.f32 %v2026, 0.125
        %v2155 = vmul.f32 %v2027, 0.125
        %v2156 = vmul.f32 %v2028, 0.125
        %v2157 = vmul.f32 %v2029, 0.125
        %v2158 = vmul.f32 %v2030, 0.125
        %v2159 = vmul.f32 %v2031, 0.125
        %v2160 = vmul.f32 %v2032, 0.125
        %v2161 = vmul.f32 %v2033, 0.125
        %v2162 = vmul.f32 %v2034, 0.125
        %v2163 = vmul.f32 %v2035, 0.125
        %v2164 = vmul.f32 %v2036, 0.125
        %v2165 = vmul.f32 %v2037, 0.125
        %v2166 = vmul.f32 %v2038, 0.125
        %v2167 = vmul.f32 %v2039, 0.125
        %v2168 = vmul.f32 %v2040, 0.125
        %v2169 = vmul.f32 %v2041, 0.125
        %v2170 = vmul.f32 %v2042, 0.125
        %v2171 = vmul.f32 %v2043, 0.125
        %v2172 = vmul.f32 %v2044, 0.125
        %v2173 = vmul.f32 %v2045, 0.125
        %v2174 = vmul.f32 %v2046, 0.125
        %v2175 = vmul.f32 %v2047, 0.125
        %v2176 = vmul.f32 %v2048, 0.125
        %v2177 = vmul.f32 %v2049, 0.125
        %v2178 = vmul.f32 %v2050, 0.125
        %v2179 = vmul.f32 %v2051, 0.125
        %v2180 = vmul.f32 %v2052, 0.125
        %v2181 = vmul.f32 %v2053, 0.125
        %v2182 = vmul.f32 %v2054, 0.125
        %v2183 = vmul.f32 %v2055, 0.125
        %v2184 = vmul.f32 %v2056, 0.125
        %v2185 = vmul.f32 %v2057, 0.125
        %v2186 = vmul.f32 %v2058, 0.125
        %v2187 = vmul.f32 %v2059, 0.125
        %v2188 = vmul.f32 %v2060, 0.125
        %v2189 = vmul.f32 %v2061, 0.125
        %v2190 = vmul.f32 %v2062, 0.125
        %v2191 = vmul.f32 %v2063, 0.125
        %v2192 = vmul.f32 %v2064, 0.125
        %v2193 = vmul.f32 %v2065, 0.125
        %v2194 = vmul.f32 %v2066, 0.125
        %v2195 = vmul.f32 %v2067, 0.125
        %v2196 = vmul.f32 %v2068, 0.125
        %v2197 = vmul.f32 %v2069, 0.125
        %v2198 = vmul.f32 %v2070, 0.125
        %v2199 = vmul.f32 %v2071, 0.125
        %v2200 = vmul.f32 %v2072, 0.125
        %v2201 = vmul.f32 %v2073, 0.125
        %v2330 = vrot.slane %v2075, 7
        %vm2331 = vcmask 1041409
        %v2332 = vsel %vm2331, %v2330, %v2074
        %v2333 = vrot.slane %v2076, 6
        %vm2334 = vcmask 1042434
        %v2335 = vsel %vm2334, %v2333, %v2332
        %v2336 = vrot.slane %v2077, 5
        %vm2337 = vcmask 1043459
        %v2338 = vsel %vm2337, %v2336, %v2335
        %v2339 = vrot.slane %v2078, 4
        %vm2340 = vcmask 1044484
        %v2341 = vsel %vm2340, %v2339, %v2338
        %v2342 = vrot.slane %v2079, 3
        %vm2343 = vcmask 1045509
        %v2344 = vsel %vm2343, %v2342, %v2341
        %v2345 = vrot.slane %v2080, 2
        %vm2346 = vcmask 1046534
        %v2347 = vsel %vm2346, %v2345, %v2344
        %v2348 = vrot.slane %v2081, 1
        %vm2349 = vcmask 1047559
        %v2350 = vsel %vm2349, %v2348, %v2347
        %v2351 = vrot.slane %v2083, 7
        %v2352 = vsel %vm2331, %v2351, %v2082
        %v2353 = vrot.slane %v2084, 6
        %v2354 = vsel %vm2334, %v2353, %v2352
        %v2355 = vrot.slane %v2085, 5
        %v2356 = vsel %vm2337, %v2355, %v2354
        %v2357 = vrot.slane %v2086, 4
        %v2358 = vsel %vm2340, %v2357, %v2356
        %v2359 = vrot.slane %v2087, 3
        %v2360 = vsel %vm2343, %v2359, %v2358
        %v2361 = vrot.slane %v2088, 2
        %v2362 = vsel %vm2346, %v2361, %v2360
        %v2363 = vrot.slane %v2089, 1
        %v2364 = vsel %vm2349, %v2363, %v2362
        %v2365 = vrot.slane %v2091, 7
        %v2366 = vsel %vm2331, %v2365, %v2090
        %v2367 = vrot.slane %v2092, 6
        %v2368 = vsel %vm2334, %v2367, %v2366
        %v2369 = vrot.slane %v2093, 5
        %v2370 = vsel %vm2337, %v2369, %v2368
        %v2371 = vrot.slane %v2094, 4
        %v2372 = vsel %vm2340, %v2371, %v2370
        %v2373 = vrot.slane %v2095, 3
        %v2374 = vsel %vm2343, %v2373, %v2372
        %v2375 = vrot.slane %v2096, 2
        %v2376 = vsel %vm2346, %v2375, %v2374
        %v2377 = vrot.slane %v2097, 1
        %v2378 = vsel %vm2349, %v2377, %v2376
        %v2379 = vrot.slane %v2099, 7
        %v2380 = vsel %vm2331, %v2379, %v2098
        %v2381 = vrot.slane %v2100, 6
        %v2382 = vsel %vm2334, %v2381, %v2380
        %v2383 = vrot.slane %v2101, 5
        %v2384 = vsel %vm2337, %v2383, %v2382
        %v2385 = vrot.slane %v2102, 4
        %v2386 = vsel %vm2340, %v2385, %v2384
        %v2387 = vrot.slane %v2103, 3
        %v2388 = vsel %vm2343, %v2387, %v2386
        %v2389 = vrot.slane %v2104, 2
        %v2390 = vsel %vm2346, %v2389, %v2388
        %v2391 = vrot.slane %v2105, 1
        %v2392 = vsel %vm2349, %v2391, %v2390
        %v2393 = vrot.slane %v2107, 7
        %v2394 = vsel %vm2331, %v2393, %v2106
        %v2395 = vrot.slane %v2108, 6
        %v2396 = vsel %vm2334, %v2395, %v2394
        %v2397 = vrot.slane %v2109, 5
        %v2398 = vsel %vm2337, %v2397, %v2396
        %v2399 = vrot.slane %v2110, 4
        %v2400 = vsel %vm2340, %v2399, %v2398
        %v2401 = vrot.slane %v2111, 3
        %v2402 = vsel %vm2343, %v2401, %v2400
        %v2403 = vrot.slane %v2112, 2
        %v2404 = vsel %vm2346, %v2403, %v2402
        %v2405 = vrot.slane %v2113, 1
        %v2406 = vsel %vm2349, %v2405, %v2404
        %v2407 = vrot.slane %v2115, 7
        %v2408 = vsel %vm2331, %v2407, %v2114
        %v2409 = vrot.slane %v2116, 6
        %v2410 = vsel %vm2334, %v2409, %v2408
        %v2411 = vrot.slane %v2117, 5
        %v2412 = vsel %vm2337, %v2411, %v2410
        %v2413 = vrot.slane %v2118, 4
        %v2414 = vsel %vm2340, %v2413, %v2412
        %v2415 = vrot.slane %v2119, 3
        %v2416 = vsel %vm2343, %v2415, %v2414
        %v2417 = vrot.slane %v2120, 2
        %v2418 = vsel %vm2346, %v2417, %v2416
        %v2419 = vrot.slane %v2121, 1
        %v2420 = vsel %vm2349, %v2419, %v2418
        %v2421 = vrot.slane %v2123, 7
        %v2422 = vsel %vm2331, %v2421, %v2122
        %v2423 = vrot.slane %v2124, 6
        %v2424 = vsel %vm2334, %v2423, %v2422
        %v2425 = vrot.slane %v2125, 5
        %v2426 = vsel %vm2337, %v2425, %v2424
        %v2427 = vrot.slane %v2126, 4
        %v2428 = vsel %vm2340, %v2427, %v2426
        %v2429 = vrot.slane %v2127, 3
        %v2430 = vsel %vm2343, %v2429, %v2428
        %v2431 = vrot.slane %v2128, 2
        %v2432 = vsel %vm2346, %v2431, %v2430
        %v2433 = vrot.slane %v2129, 1
        %v2434 = vsel %vm2349, %v2433, %v2432
        %v2435 = vrot.slane %v2131, 7
        %v2436 = vsel %vm2331, %v2435, %v2130
        %v2437 = vrot.slane %v2132, 6
        %v2438 = vsel %vm2334, %v2437, %v2436
        %v2439 = vrot.slane %v2133, 5
        %v2440 = vsel %vm2337, %v2439, %v2438
        %v2441 = vrot.slane %v2134, 4
        %v2442 = vsel %vm2340, %v2441, %v2440
        %v2443 = vrot.slane %v2135, 3
        %v2444 = vsel %vm2343, %v2443, %v2442
        %v2445 = vrot.slane %v2136, 2
        %v2446 = vsel %vm2346, %v2445, %v2444
        %v2447 = vrot.slane %v2137, 1
        %v2448 = vsel %vm2349, %v2447, %v2446
        %v2449 = vrot.slane %v2139, 7
        %v2450 = vsel %vm2331, %v2449, %v2138
        %v2451 = vrot.slane %v2140, 6
        %v2452 = vsel %vm2334, %v2451, %v2450
        %v2453 = vrot.slane %v2141, 5
        %v2454 = vsel %vm2337, %v2453, %v2452
        %v2455 = vrot.slane %v2142, 4
        %v2456 = vsel %vm2340, %v2455, %v2454
        %v2457 = vrot.slane %v2143, 3
        %v2458 = vsel %vm2343, %v2457, %v2456
        %v2459 = vrot.slane %v2144, 2
        %v2460 = vsel %vm2346, %v2459, %v2458
        %v2461 = vrot.slane %v2145, 1
        %v2462 = vsel %vm2349, %v2461, %v2460
        %v2463 = vrot.slane %v2147, 7
        %v2464 = vsel %vm2331, %v2463, %v2146
        %v2465 = vrot.slane %v2148, 6
        %v2466 = vsel %vm2334, %v2465, %v2464
        %v2467 = vrot.slane %v2149, 5
        %v2468 = vsel %vm2337, %v2467, %v2466
        %v2469 = vrot.slane %v2150, 4
        %v2470 = vsel %vm2340, %v2469, %v2468
        %v2471 = vrot.slane %v2151, 3
        %v2472 = vsel %vm2343, %v2471, %v2470
        %v2473 = vrot.slane %v2152, 2
        %v2474 = vsel %vm2346, %v2473, %v2472
        %v2475 = vrot.slane %v2153, 1
        %v2476 = vsel %vm2349, %v2475, %v2474
        %v2477 = vrot.slane %v2155, 7
        %v2478 = vsel %vm2331, %v2477, %v2154
        %v2479 = vrot.slane %v2156, 6
        %v2480 = vsel %vm2334, %v2479, %v2478
        %v2481 = vrot.slane %v2157, 5
        %v2482 = vsel %vm2337, %v2481, %v2480
        %v2483 = vrot.slane %v2158, 4
        %v2484 = vsel %vm2340, %v2483, %v2482
        %v2485 = vrot.slane %v2159, 3
        %v2486 = vsel %vm2343, %v2485, %v2484
        %v2487 = vrot.slane %v2160, 2
        %v2488 = vsel %vm2346, %v2487, %v2486
        %v2489 = vrot.slane %v2161, 1
        %v2490 = vsel %vm2349, %v2489, %v2488
        %v2491 = vrot.slane %v2163, 7
        %v2492 = vsel %vm2331, %v2491, %v2162
        %v2493 = vrot.slane %v2164, 6
        %v2494 = vsel %vm2334, %v2493, %v2492
        %v2495 = vrot.slane %v2165, 5
        %v2496 = vsel %vm2337, %v2495, %v2494
        %v2497 = vrot.slane %v2166, 4
        %v2498 = vsel %vm2340, %v2497, %v2496
        %v2499 = vrot.slane %v2167, 3
        %v2500 = vsel %vm2343, %v2499, %v2498
        %v2501 = vrot.slane %v2168, 2
        %v2502 = vsel %vm2346, %v2501, %v2500
        %v2503 = vrot.slane %v2169, 1
        %v2504 = vsel %vm2349, %v2503, %v2502
        %v2505 = vrot.slane %v2171, 7
        %v2506 = vsel %vm2331, %v2505, %v2170
        %v2507 = vrot.slane %v2172, 6
        %v2508 = vsel %vm2334, %v2507, %v2506
        %v2509 = vrot.slane %v2173, 5
        %v2510 = vsel %vm2337, %v2509, %v2508
        %v2511 = vrot.slane %v2174, 4
        %v2512 = vsel %vm2340, %v2511, %v2510
        %v2513 = vrot.slane %v2175, 3
        %v2514 = vsel %vm2343, %v2513, %v2512
        %v2515 = vrot.slane %v2176, 2
        %v2516 = vsel %vm2346, %v2515, %v2514
        %v2517 = vrot.slane %v2177, 1
        %v2518 = vsel %vm2349, %v2517, %v2516
        %v2519 = vrot.slane %v2179, 7
        %v2520 = vsel %vm2331, %v2519, %v2178
        %v2521 = vrot.slane %v2180, 6
        %v2522 = vsel %vm2334, %v2521, %v2520
        %v2523 = vrot.slane %v2181, 5
        %v2524 = vsel %vm2337, %v2523, %v2522
        %v2525 = vrot.slane %v2182, 4
        %v2526 = vsel %vm2340, %v2525, %v2524
        %v2527 = vrot.slane %v2183, 3
        %v2528 = vsel %vm2343, %v2527, %v2526
        %v2529 = vrot.slane %v2184, 2
        %v2530 = vsel %vm2346, %v2529, %v2528
        %v2531 = vrot.slane %v2185, 1
        %v2532 = vsel %vm2349, %v2531, %v2530
        %v2533 = vrot.slane %v2187, 7
        %v2534 = vsel %vm2331, %v2533, %v2186
        %v2535 = vrot.slane %v2188, 6
        %v2536 = vsel %vm2334, %v2535, %v2534
        %v2537 = vrot.slane %v2189, 5
        %v2538 = vsel %vm2337, %v2537, %v2536
        %v2539 = vrot.slane %v2190, 4
        %v2540 = vsel %vm2340, %v2539, %v2538
        %v2541 = vrot.slane %v2191, 3
        %v2542 = vsel %vm2343, %v2541, %v2540
        %v2543 = vrot.slane %v2192, 2
        %v2544 = vsel %vm2346, %v2543, %v2542
        %v2545 = vrot.slane %v2193, 1
        %v2546 = vsel %vm2349, %v2545, %v2544
        %v2547 = vrot.slane %v2195, 7
        %v2548 = vsel %vm2331, %v2547, %v2194
        %v2549 = vrot.slane %v2196, 6
        %v2550 = vsel %vm2334, %v2549, %v2548
        %v2551 = vrot.slane %v2197, 5
        %v2552 = vsel %vm2337, %v2551, %v2550
        %v2553 = vrot.slane %v2198, 4
        %v2554 = vsel %vm2340, %v2553, %v2552
        %v2555 = vrot.slane %v2199, 3
        %v2556 = vsel %vm2343, %v2555, %v2554
        %v2557 = vrot.slane %v2200, 2
        %v2558 = vsel %vm2346, %v2557, %v2556
        %v2559 = vrot.slane %v2201, 1
        %v2560 = vsel %vm2349, %v2559, %v2558
        %2577 = vst [vmem:[%s151] sm:$0xff] %v2350
        %2578 = vst [vmem:[%s151 + $0x8] sm:$0xff] %v2364
        %2579 = vst [vmem:[%s151 + $0x10] sm:$0xff] %v2378
        %2580 = vst [vmem:[%s151 + $0x18] sm:$0xff] %v2392
        %2581 = vst [vmem:[%s151 + $0x20] sm:$0xff] %v2406
        %2582 = vst [vmem:[%s151 + $0x28] sm:$0xff] %v2420
        %2583 = vst [vmem:[%s151 + $0x30] sm:$0xff] %v2434
        %2584 = vst [vmem:[%s151 + $0x38] sm:$0xff] %v2448
        %2585 = vst [vmem:[%s151 + $0x40] sm:$0xff] %v2462
        %2586 = vst [vmem:[%s151 + $0x48] sm:$0xff] %v2476
        %2587 = vst [vmem:[%s151 + $0x50] sm:$0xff] %v2490
        %2588 = vst [vmem:[%s151 + $0x58] sm:$0xff] %v2504
        %2589 = vst [vmem:[%s151 + $0x60] sm:$0xff] %v2518
        %2590 = vst [vmem:[%s151 + $0x68] sm:$0xff] %v2532
        %2591 = vst [vmem:[%s151 + $0x70] sm:$0xff] %v2546
        %2592 = vst [vmem:[%s151 + $0x78] sm:$0xff] %v2560
        %s2593 = sand.u32 %s68, 1
        %s2594 = scalar_lea.sflag [#allocation4], %s2593
        %s2595 = sand.u32 %s68, 1
        %s2596 = smul.addr %s2595, 128
        %s2597 = scalar_lea.vmem [#allocation5], %s2596
        // Predicated region
        $region29: #{tpu_custom_call.1} parent=23 // pred_check
          %p2598 = pneg %p78
        $region30: #{tpu_custom_call.1} parent=23 // pred_check_branch
          %2600 = sbr.rel (%p2598) target = $region32
        $region31: #{tpu_custom_call.1} parent=23 // pred_region
          %s2601 = smul.u32 16, %s22
          %s2603 = ssub.s32 2048, 2048
          %2604 = vsyncadd %s2594, %s2603
          %s2605 = sadd.s32 %s23, %s2601
          %s2606 = smul.addr %s2605, 128
          %s2607 = scalar_lea.hbm %s1, %s2606
          %s2608 = sshll.u32 %s2597, 4
          %s2609 = int_to_ptr.vmem [resolvable:$true] %s2608
          %2614 = dma.vmem_to_hbm [thread:$0]  %s2609, 2048, %s2607, %s2594, 128, 128, 8
        $region32: #{tpu_custom_call.1} parent=23 // pred_fallthru
          _
      $region24: #{tpu_custom_call.1} parent=5 // pred_fallthru
        _
      %p2615 = scmp.le.s32.totalorder 2, %s13
      // Predicated region
      $region33: #{tpu_custom_call.1} parent=5 // pred_check
        %p2616 = pneg %p2615
      $region34: #{tpu_custom_call.1} parent=5 // pred_check_branch
        %2618 = sbr.rel (%p2616) target = $region36
      $region35: #{tpu_custom_call.1} parent=5 // pred_region
        %s2619 = ssub.s32 %s13, 2
        // Predicated region
        $region37: #{tpu_custom_call.1} parent=35 // pred_check
          %p2620 = pneg %p84
        $region38: #{tpu_custom_call.1} parent=35 // pred_check_branch
          %2622 = sbr.rel (%p2620) target = $region40
        $region39: #{tpu_custom_call.1} parent=35 // pred_region
          %s2623 = sand.u32 %s69, 1
          %s2624 = scalar_lea.sflag [#allocation4], %s2623
          %s2625 = sand.u32 %s69, 1
          %s2626 = smul.addr %s2625, 128
          %s2627 = scalar_lea.vmem [#allocation5], %s2626
          %2628 = dma.done %s2624, 2048
        $region40: #{tpu_custom_call.1} parent=35 // pred_fallthru
          _
      $region36: #{tpu_custom_call.1} parent=5 // pred_fallthru
        _
    $region6: #{tpu_custom_call.1} parent=1 // loop_footer
      %s17 = sadd.s32 1, %s13
    $region7: #{tpu_custom_call.1} parent=1 // loop_footer_branch
      %12 = sbr.rel target = $region3
    $region8: #{tpu_custom_call.1} parent=1 // loop_exit
      _
    %2629 = vsyncpa [#allocation3], 1
    %s2630 = scalar_lea.sflag [#allocation3], 1
    %2631 = vsyncpa %s2630, 1
    %2632 = vsyncpa [#allocation4], 1
    %s2633 = scalar_lea.sflag [#allocation4], 1
    %2634 = vsyncpa %s2633, 1

</llo_original>
